<compile_context>
chip_gen: v7x
topology: tpu7x:2x2x1
jax: 0.10.0
libtpu: 0.0.40
codegen_flags: <defaults>
</compile_context>

<pallas_src>
import functools

import numpy as np
import jax
import jax.numpy as jnp
from jax.experimental import pallas as pl
from jax.experimental.pallas import tpu as pltpu


FILTER_SIZE = 11
FILTER_SIGMA = 1.5
MAX_VAL = 255.0          # unnormalized_max
K1, K2 = 0.01, 0.03
COMPENSATION = 1.0
PAD = (FILTER_SIZE - 1) // 2
C1 = (K1 * MAX_VAL) ** 2
C2 = (K2 * MAX_VAL) ** 2 * COMPENSATION


def _gauss_1d(filter_size=FILTER_SIZE, filter_sigma=FILTER_SIGMA):
    """1-D factor g1 such that outer(g1, g1) == SSIM._fspecial_gauss(...)."""
    coords = np.arange(filter_size, dtype=np.float64)
    coords -= (filter_size - 1.0) / 2.0
    g = -0.5 * np.square(coords) / (filter_sigma ** 2)
    g = np.exp(g - g.max())
    return g / g.sum()                      # (filter_size,), float64


def _fspecial_gauss_2d(filter_size=FILTER_SIZE, filter_sigma=FILTER_SIGMA):
    """Direct port of SSIM._fspecial_gauss (one channel), for the reference."""
    coords = np.arange(filter_size, dtype=np.float64)
    coords -= (filter_size - 1.0) / 2.0
    g = -0.5 * np.square(coords) / (filter_sigma ** 2)
    g = g.reshape(1, -1) + g.reshape(-1, 1)
    g = g.reshape(-1)
    g = np.exp(g - g.max())
    g = g / g.sum()
    return g.reshape(filter_size, filter_size)


def _conv_matrix(n, g1):
    """(n, n) matrix M with (M @ x)[i] = sum_k g1[k] * x_zeropad[i + k - PAD]."""
    m = np.zeros((n, n), dtype=np.float64)
    for i in range(n):
        for k in range(FILTER_SIZE):
            j = i + k - PAD
            if 0 <= j < n:
                m[i, j] = g1[k]
    return m


def _make_ssim_kernel(C, H, W):
    inv_count = 1.0 / float(C * H * W)

    def kernel(t_ref, o_ref, bdv_ref, th_ref, out_ref):
        # t_ref / o_ref : (1, C*H, W) raw (unrescaled, unpadded) planes.
        # bdv_ref       : (C*H, C*H) block-diag vertical Gaussian (zero-pad folded).
        # th_ref        : (W, W) horizontal Gaussian (zero-pad folded).
        x = t_ref[0].astype(jnp.float32) * 127.5 + 127.5
        y = o_ref[0].astype(jnp.float32) * 127.5 + 127.5
        bdv = bdv_ref[...]
        th = th_ref[...]

        def gauss_filter(p):
            # Separable 11x11 conv == two Toeplitz matmuls on the MXU.
            v = jnp.dot(bdv, p, preferred_element_type=jnp.float32)
            return jnp.dot(v, th, preferred_element_type=jnp.float32)

        m0 = gauss_filter(x)
        m1 = gauss_filter(y)
        f_xy = gauss_filter(x * y)             # products hoisted: computed once
        f_sq = gauss_filter(x * x + y * y)

        num0 = 2.0 * (m0 * m1)
        den0 = m0 * m0 + m1 * m1
        lum = (num0 + C1) * pl.reciprocal(den0 + C1, approx=True)
        cs = (2.0 * f_xy - num0 + C2) * pl.reciprocal(f_sq - den0 + C2, approx=True)
        ssim_map = lum * cs                    # (C*H, W)

        # mean over (C, H, W): channel-mean of (H, W)-means == one global mean.
        out_ref[...] = jnp.reshape(jnp.sum(ssim_map) * inv_count, (1, 1, 1))

    return kernel


@functools.partial(jax.jit, static_argnames=("global_batch_size",))
def ssim_loss(targets, outputs, global_batch_size):
    """StructureSimilarityIndexMap.forward for 4-D NCHW inputs."""
    # TODO(synk): the 5-D branch of StructureSimilarityIndexMap.forward (loop
    # over dim 1) is not implemented; only the 4-D NCHW path is.
    targets = jnp.reshape(targets, outputs.shape)
    N, C, H, W = outputs.shape

    # Constant separable-filter matrices, built at trace time in float64.
    g1 = _gauss_1d()
    tv = _conv_matrix(H, g1)                            # (H, H)   vertical
    bdv = np.kron(np.eye(C, dtype=np.float64), tv)      # (C*H, C*H) per-channel
    th = _conv_matrix(W, g1).T                          # (W, W)   horizontal
    bdv = jnp.asarray(bdv, dtype=jnp.float32)
    th = jnp.asarray(th, dtype=jnp.float32)

    # Metadata-only reshapes: all channel planes of one example stacked on
    # the sublane axis, lane axis = W.
    t3 = jnp.reshape(targets, (N, C * H, W))
    o3 = jnp.reshape(outputs, (N, C * H, W))

    # TODO(synk): for large images (C*H*W*4B per block approaching VMEM) tile
    # over H with a 2*PAD halo instead of one block-diag matmul per example.
    per_example = pl.pallas_call(
        _make_ssim_kernel(C, H, W),
        out_shape=jax.ShapeDtypeStruct((N, 1, 1), jnp.float32),
        grid_spec=pltpu.PrefetchScalarGridSpec(
            num_scalar_prefetch=0,
            grid=(N,),
            in_specs=[
                pl.BlockSpec((1, C * H, W), lambda n: (n, 0, 0)),
                pl.BlockSpec((1, C * H, W), lambda n: (n, 0, 0)),
                pl.BlockSpec((C * H, C * H), lambda n: (0, 0)),
                pl.BlockSpec((W, W), lambda n: (0, 0)),
            ],
            out_specs=pl.BlockSpec((1, 1, 1), lambda n: (n, 0, 0)),
        ),
        compiler_params=pltpu.CompilerParams(
            dimension_semantics=("parallel",)),
    )(t3, o3, bdv, th)

    # StructureSimilarityIndexMap.calculate: sum over batch / batch_size.
    return jnp.sum(per_example) / global_batch_size


def _reference_loss(targets, outputs, global_batch_size):
    """Pure-numpy float64 reference of the PyTorch forward (direct 121-tap)."""
    t = np.asarray(targets, dtype=np.float64) * 127.5 + 127.5
    o = np.asarray(outputs, dtype=np.float64) * 127.5 + 127.5
    w = _fspecial_gauss_2d()
    N, C, H, W = o.shape

    def filt(x):
        xp = np.pad(x, ((0, 0), (0, 0), (PAD, PAD), (PAD, PAD)))
        out = np.zeros_like(x)
        for di in range(FILTER_SIZE):
            for dj in range(FILTER_SIZE):
                out += w[di, dj] * xp[:, :, di:di + H, dj:dj + W]
        return out

    m0, m1 = filt(t), filt(o)
    num0 = 2.0 * m0 * m1
    den0 = m0 ** 2 + m1 ** 2
    lum = (num0 + C1) / (den0 + C1)
    num1 = 2.0 * filt(t * o)
    den1 = filt(t ** 2 + o ** 2)
    cs = (num1 - num0 + C2) / (den1 - den0 + C2)
    per_nc = (lum * cs).mean(axis=(-2, -1))
    per_ex = per_nc.mean(axis=-1)
    return per_ex.sum() / global_batch_size


if __name__ == "__main__":
    # Sanity: the softmax'd 2-D kernel is exactly rank-1 == outer(g1, g1).
    g1 = _gauss_1d()
    np.testing.assert_allclose(np.outer(g1, g1), _fspecial_gauss_2d(),
                               rtol=0, atol=1e-12)

    key = jax.random.PRNGKey(0)
    ka, kb = jax.random.split(key)
    # Inputs in [-1, 1], NCHW: batch=2, channels=4, spatial=16x16.
    targets = jnp.tanh(jax.random.normal(ka, (2, 4, 16, 16), dtype=jnp.float32))
    outputs = jnp.tanh(jax.random.normal(kb, (2, 4, 16, 16), dtype=jnp.float32))

    loss = ssim_loss(targets, outputs, global_batch_size=2)
    loss = jax.block_until_ready(loss)

    ref = _reference_loss(targets, outputs, 2)
    assert np.isfinite(float(loss))
    # Tolerance leaves headroom for the EUP approximate reciprocals and MXU
    # rounding of the Toeplitz matmuls.
    np.testing.assert_allclose(float(loss), float(ref), rtol=2e-3, atol=2e-3)
    print("KERNEL_OK")
</pallas_src>

<mosaic_0001>
module attributes {stable_mosaic.version = 11 : i64} {
  func.func @kernel(%arg0: i32, %arg1: memref<1x64x16xf32, #tpu.memory_space<vmem>>, %arg2: memref<1x64x16xf32, #tpu.memory_space<vmem>>, %arg3: memref<64x64xf32, #tpu.memory_space<vmem>>, %arg4: memref<16x16xf32, #tpu.memory_space<vmem>>, %arg5: memref<1x1x1xf32, #tpu.memory_space<vmem>>) attributes {dimension_semantics = [#tpu.dimension_semantics<parallel>], iteration_bounds = array<i64: 2>, scalar_prefetch = 0 : i64, scratch_operands = 0 : i64, tpu.core_type = #tpu.core_type<tc>, window_params = [{transform_indices = @transform_0, window_bounds = array<i64: 1, 64, 16>}, {transform_indices = @transform_1, window_bounds = array<i64: 1, 64, 16>}, {pipeline_mode = #tpu.pipeline_mode<synchronous>, transform_indices = @transform_2, window_bounds = array<i64: 64, 64>}, {pipeline_mode = #tpu.pipeline_mode<synchronous>, transform_indices = @transform_3, window_bounds = array<i64: 16, 16>}, {transform_indices = @transform_4, window_bounds = array<i64: 1, 1, 1>}]} {
    %c0 = arith.constant 0 : index
    %c0_0 = arith.constant 0 : index
    %c0_1 = arith.constant 0 : index
    %0 = vector.load %arg1[%c0, %c0_0, %c0_1] : memref<1x64x16xf32, #tpu.memory_space<vmem>>, vector<1x64x16xf32>
    %1 = vector.shape_cast %0 : vector<1x64x16xf32> to vector<64x16xf32>
    %cst = arith.constant 1.275000e+02 : f32
    %2 = vector.broadcast %cst : f32 to vector<64x16xf32>
    %3 = arith.mulf %1, %2 : vector<64x16xf32>
    %cst_2 = arith.constant 1.275000e+02 : f32
    %4 = vector.broadcast %cst_2 : f32 to vector<64x16xf32>
    %5 = arith.addf %3, %4 : vector<64x16xf32>
    %c0_3 = arith.constant 0 : index
    %c0_4 = arith.constant 0 : index
    %c0_5 = arith.constant 0 : index
    %6 = vector.load %arg2[%c0_3, %c0_4, %c0_5] : memref<1x64x16xf32, #tpu.memory_space<vmem>>, vector<1x64x16xf32>
    %7 = vector.shape_cast %6 : vector<1x64x16xf32> to vector<64x16xf32>
    %cst_6 = arith.constant 1.275000e+02 : f32
    %8 = vector.broadcast %cst_6 : f32 to vector<64x16xf32>
    %9 = arith.mulf %7, %8 : vector<64x16xf32>
    %cst_7 = arith.constant 1.275000e+02 : f32
    %10 = vector.broadcast %cst_7 : f32 to vector<64x16xf32>
    %11 = arith.addf %9, %10 : vector<64x16xf32>
    %c0_8 = arith.constant 0 : index
    %c0_9 = arith.constant 0 : index
    %12 = vector.load %arg3[%c0_8, %c0_9] : memref<64x64xf32, #tpu.memory_space<vmem>>, vector<64x64xf32>
    %c0_10 = arith.constant 0 : index
    %c0_11 = arith.constant 0 : index
    %13 = vector.load %arg4[%c0_10, %c0_11] : memref<16x16xf32, #tpu.memory_space<vmem>>, vector<16x16xf32>
    %cst_12 = arith.constant dense<0.000000e+00> : vector<64x16xf32>
    %14 = tpu.matmul %12, %5, %cst_12 {dimension_numbers = #tpu.dot_dimension_numbers<[1], [0], [0], [1], [0, 0, 1, 1], [], []>} : vector<64x64xf32>, vector<64x16xf32>, vector<64x16xf32> -> vector<64x16xf32>
    %cst_13 = arith.constant dense<0.000000e+00> : vector<64x16xf32>
    %15 = tpu.matmul %14, %13, %cst_13 {dimension_numbers = #tpu.dot_dimension_numbers<[1], [0], [0], [1], [0, 0, 1, 1], [], []>} : vector<64x16xf32>, vector<16x16xf32>, vector<64x16xf32> -> vector<64x16xf32>
    %cst_14 = arith.constant dense<0.000000e+00> : vector<64x16xf32>
    %16 = tpu.matmul %12, %11, %cst_14 {dimension_numbers = #tpu.dot_dimension_numbers<[1], [0], [0], [1], [0, 0, 1, 1], [], []>} : vector<64x64xf32>, vector<64x16xf32>, vector<64x16xf32> -> vector<64x16xf32>
    %cst_15 = arith.constant dense<0.000000e+00> : vector<64x16xf32>
    %17 = tpu.matmul %16, %13, %cst_15 {dimension_numbers = #tpu.dot_dimension_numbers<[1], [0], [0], [1], [0, 0, 1, 1], [], []>} : vector<64x16xf32>, vector<16x16xf32>, vector<64x16xf32> -> vector<64x16xf32>
    %18 = arith.mulf %5, %11 : vector<64x16xf32>
    %cst_16 = arith.constant dense<0.000000e+00> : vector<64x16xf32>
    %19 = tpu.matmul %12, %18, %cst_16 {dimension_numbers = #tpu.dot_dimension_numbers<[1], [0], [0], [1], [0, 0, 1, 1], [], []>} : vector<64x64xf32>, vector<64x16xf32>, vector<64x16xf32> -> vector<64x16xf32>
    %cst_17 = arith.constant dense<0.000000e+00> : vector<64x16xf32>
    %20 = tpu.matmul %19, %13, %cst_17 {dimension_numbers = #tpu.dot_dimension_numbers<[1], [0], [0], [1], [0, 0, 1, 1], [], []>} : vector<64x16xf32>, vector<16x16xf32>, vector<64x16xf32> -> vector<64x16xf32>
    %21 = arith.mulf %5, %5 : vector<64x16xf32>
    %22 = arith.mulf %11, %11 : vector<64x16xf32>
    %23 = arith.addf %21, %22 : vector<64x16xf32>
    %cst_18 = arith.constant dense<0.000000e+00> : vector<64x16xf32>
    %24 = tpu.matmul %12, %23, %cst_18 {dimension_numbers = #tpu.dot_dimension_numbers<[1], [0], [0], [1], [0, 0, 1, 1], [], []>} : vector<64x64xf32>, vector<64x16xf32>, vector<64x16xf32> -> vector<64x16xf32>
    %cst_19 = arith.constant dense<0.000000e+00> : vector<64x16xf32>
    %25 = tpu.matmul %24, %13, %cst_19 {dimension_numbers = #tpu.dot_dimension_numbers<[1], [0], [0], [1], [0, 0, 1, 1], [], []>} : vector<64x16xf32>, vector<16x16xf32>, vector<64x16xf32> -> vector<64x16xf32>
    %26 = arith.mulf %15, %17 : vector<64x16xf32>
    %cst_20 = arith.constant 2.000000e+00 : f32
    %27 = vector.broadcast %cst_20 : f32 to vector<64x16xf32>
    %28 = arith.mulf %27, %26 : vector<64x16xf32>
    %29 = arith.mulf %15, %15 : vector<64x16xf32>
    %30 = arith.mulf %17, %17 : vector<64x16xf32>
    %31 = arith.addf %29, %30 : vector<64x16xf32>
    %cst_21 = arith.constant 6.502500e+00 : f32
    %32 = vector.broadcast %cst_21 : f32 to vector<64x16xf32>
    %33 = arith.addf %28, %32 : vector<64x16xf32>
    %cst_22 = arith.constant 6.502500e+00 : f32
    %34 = vector.broadcast %cst_22 : f32 to vector<64x16xf32>
    %35 = arith.addf %31, %34 : vector<64x16xf32>
    %36 = tpu.reciprocal %35 {approx = true} : vector<64x16xf32> -> vector<64x16xf32>
    %37 = arith.mulf %33, %36 : vector<64x16xf32>
    %cst_23 = arith.constant 2.000000e+00 : f32
    %38 = vector.broadcast %cst_23 : f32 to vector<64x16xf32>
    %39 = arith.mulf %38, %20 : vector<64x16xf32>
    %40 = arith.subf %39, %28 : vector<64x16xf32>
    %cst_24 = arith.constant 5.852250e+01 : f32
    %41 = vector.broadcast %cst_24 : f32 to vector<64x16xf32>
    %42 = arith.addf %40, %41 : vector<64x16xf32>
    %43 = arith.subf %25, %31 : vector<64x16xf32>
    %cst_25 = arith.constant 5.852250e+01 : f32
    %44 = vector.broadcast %cst_25 : f32 to vector<64x16xf32>
    %45 = arith.addf %43, %44 : vector<64x16xf32>
    %46 = tpu.reciprocal %45 {approx = true} : vector<64x16xf32> -> vector<64x16xf32>
    %47 = arith.mulf %42, %46 : vector<64x16xf32>
    %48 = arith.mulf %37, %47 : vector<64x16xf32>
    %49 = vector.shape_cast %48 : vector<64x16xf32> to vector<1x64x16xf32>
    %cst_26 = arith.constant dense<0.000000e+00> : vector<1xf32>
    %50 = vector.multi_reduction <add>, %49, %cst_26 [1, 2] : vector<1x64x16xf32> to vector<1xf32>
    %51 = vector.shape_cast %50 : vector<1xf32> to vector<1x1x1xf32>
    %52 = vector.extract %51[0, 0, 0] : f32 from vector<1x1x1xf32>
    %cst_27 = arith.constant 9.765625E-4 : f32
    %53 = arith.mulf %52, %cst_27 : f32
    %54 = vector.broadcast %53 : f32 to vector<1x1x1xf32>
    %c0_28 = arith.constant 0 : index
    %c0_29 = arith.constant 0 : index
    %c0_30 = arith.constant 0 : index
    %55 = vector.load %arg5[%c0_28, %c0_29, %c0_30] : memref<1x1x1xf32, #tpu.memory_space<vmem>>, vector<1x1x1xf32>
    tpu.vector_store %arg5[%c0_28, %c0_29, %c0_30], %54 {strides = array<i32>} : memref<1x1x1xf32, #tpu.memory_space<vmem>>, vector<1x1x1xf32>,
    return
  }
  func.func @transform_0(%arg0: i32) -> (i32, i32, i32) {
    %c0_i32 = arith.constant 0 : i32
    %c0_i32_0 = arith.constant 0 : i32
    %c0_i32_1 = arith.constant 0 : i32
    return %arg0, %c0_i32, %c0_i32_0 : i32, i32, i32
  }
  func.func @transform_1(%arg0: i32) -> (i32, i32, i32) {
    %c0_i32 = arith.constant 0 : i32
    %c0_i32_0 = arith.constant 0 : i32
    %c0_i32_1 = arith.constant 0 : i32
    return %arg0, %c0_i32, %c0_i32_0 : i32, i32, i32
  }
  func.func @transform_2(%arg0: i32) -> (i32, i32) {
    %c0_i32 = arith.constant 0 : i32
    %c0_i32_0 = arith.constant 0 : i32
    %c0_i32_1 = arith.constant 0 : i32
    return %c0_i32, %c0_i32_0 : i32, i32
  }
  func.func @transform_3(%arg0: i32) -> (i32, i32) {
    %c0_i32 = arith.constant 0 : i32
    %c0_i32_0 = arith.constant 0 : i32
    %c0_i32_1 = arith.constant 0 : i32
    return %c0_i32, %c0_i32_0 : i32, i32
  }
  func.func @transform_4(%arg0: i32) -> (i32, i32, i32) {
    %c0_i32 = arith.constant 0 : i32
    %c0_i32_0 = arith.constant 0 : i32
    %c0_i32_1 = arith.constant 0 : i32
    return %arg0, %c0_i32, %c0_i32_0 : i32, i32, i32
  }
}

</mosaic_0001>

<llo_original>
// kernel: ssim_loss.1
$region0: #{ssim_loss.1}
  #allocation0 [shape = 'u32[]', space=smem, size = 0x4, offset = 0x4, fixed_abs, tag = 'smem constant byte address 0x4 - core index']
  #allocation1 [shape = 'u32[144,128]{1,0:T(1,128)}', space=vmem, size = 0x12000, scoped, tag = 'internal scratch']
  %s0 = inlined_call_operand.hbm [shape: f32[2,64,16], index: 0, kind: input, shape index: {}]
  %s1 = inlined_call_operand.hbm [shape: f32[2,64,16], index: 1, kind: input, shape index: {}]
  %s2 = inlined_call_operand.hbm [shape: f32[64,64], index: 2, kind: input, shape index: {}]
  %s3 = inlined_call_operand.vmem [shape: f32[16,16], index: 3, kind: input, shape index: {}]
  %s4 = inlined_call_operand.vmem [shape: f32[2,1,1], index: 4, kind: output, shape index: {}]
  %s5 = sld [smem:[#allocation0]]
  $region61: #{ssim_loss.1} parent=0
    _
  %s7 = ssub.s32 1, %s5
  %s8 = scalar_select 0, %s7, %s5
  $region1: #{ssim_loss.1} parent=0
    #allocation2 [shape = 'u8[65536]{0}', space=vmem, size = 0x10000, scoped, tag = 'input window, operand 0']
    #allocation3 [shape = 's32[2]{0}', space=sflag, size = 0x8, scoped, tag = 'scoped memory for ssim_loss.1']
    #allocation4 [shape = 'u8[65536]{0}', space=vmem, size = 0x10000, scoped, tag = 'input window, operand 1']
    #allocation5 [shape = 's32[2]{0}', space=sflag, size = 0x8, scoped, tag = 'scoped memory for ssim_loss.1']
    #allocation6 [shape = 'u8[32768]{0}', space=vmem, size = 0x8000, scoped, tag = 'input window, operand 2, single buffered']
    %9 = vsyncpa [#allocation3], 0
    %s10 = scalar_lea.sflag [#allocation3], 1
    %11 = vsyncpa %s10, 0
    %12 = vsyncpa [#allocation5], 0
    %s13 = scalar_lea.sflag [#allocation5], 1
    %14 = vsyncpa %s13, 0
    loop: start=0, step=1, limit=4
    $region2: #{ssim_loss.1} parent=1 // loop_pre_header
      _
    $region3: #{ssim_loss.1} parent=1 // loop_header
      %s16 = sphi 0, %s20
      %p17 = scmp.ge.s32.totalorder %s16, 4
      %s26 = sphi 0, %s28
      %s29 = sphi 0, %s26
      %s30 = sphi 0, %s29
      %s46 = sphi 0, %s30
      %s52 = sphi 0, %s54
      %s55 = sphi 0, %s52
      %s56 = sphi 0, %s55
      %s72 = sphi 0, %s56
      %s76 = sphi 0, %s76
      %s78 = sphi 0, %s76
      %s79 = sphi 0, %s78
      %s93 = sphi 0, %s79
      %s97 = sphi 0, %s97
      %s99 = sphi 0, %s97
      %s100 = sphi 0, %s99
      %s114 = sphi 0, %s100
      %s120 = sphi 0, %s122
      %s123 = sphi 0, %s120
      %s124 = sphi 0, %s123
      %s140 = sphi 0, %s124
    $region4: #{ssim_loss.1} parent=1 // loop_header_branch
      %19 = sbr.rel (%p17) target = $region8
    $region5: #{ssim_loss.1} parent=1 // loop_body
      %s21 = ssub.s32 %s16, 1
      %s22 = ssub.s32 %s16, 2
      %s23 = sadd.s32 %s16, 1
      %s24 = ssub.s32 %s16, %s23
      %p25 = scmp.eq.s32.totalorder %s24, 0
      %s27 = sadd.s32 %s26, 1
      %s28 = scalar_select %p25, %s26, %s27
      %p31 = pneg %p25
      %p32 = scmp.eq.s32.totalorder %s16, 1
      %p33 = por %p31, %p32
      %p34 = scmp.ne.s32.totalorder %s26, %s29
      %p35 = scmp.eq.s32.totalorder %s16, 0
      %p36 = por %p34, %p35
      %p37 = scmp.ne.s32.totalorder %s26, %s29
      %p38 = scmp.eq.s32.totalorder %s21, 1
      %p39 = por %p37, %p38
      %p40 = scmp.ne.s32.totalorder %s29, %s30
      %p41 = scmp.eq.s32.totalorder %s21, 0
      %p42 = por %p40, %p41
      %p43 = scmp.ne.s32.totalorder %s29, %s30
      %p44 = scmp.eq.s32.totalorder %s22, 1
      %p45 = por %p43, %p44
      %p47 = scmp.ne.s32.totalorder %s30, %s46
      %p48 = scmp.eq.s32.totalorder %s22, 0
      %p49 = por %p47, %p48
      %s50 = ssub.s32 %s16, %s23
      %p51 = scmp.eq.s32.totalorder %s50, 0
      %s53 = sadd.s32 %s52, 1
      %s54 = scalar_select %p51, %s52, %s53
      %p57 = pneg %p51
      %p58 = scmp.eq.s32.totalorder %s16, 1
      %p59 = por %p57, %p58
      %p60 = scmp.ne.s32.totalorder %s52, %s55
      %p61 = scmp.eq.s32.totalorder %s16, 0
      %p62 = por %p60, %p61
      %p63 = scmp.ne.s32.totalorder %s52, %s55
      %p64 = scmp.eq.s32.totalorder %s21, 1
      %p65 = por %p63, %p64
      %p66 = scmp.ne.s32.totalorder %s55, %s56
      %p67 = scmp.eq.s32.totalorder %s21, 0
      %p68 = por %p66, %p67
      %p69 = scmp.ne.s32.totalorder %s55, %s56
      %p70 = scmp.eq.s32.totalorder %s22, 1
      %p71 = por %p69, %p70
      %p73 = scmp.ne.s32.totalorder %s56, %s72
      %p74 = scmp.eq.s32.totalorder %s22, 0
      %p75 = por %p73, %p74
      %s77 = sadd.s32 %s76, 1
      %p80 = scmp.eq.s32.totalorder %s16, 1
      %p81 = scmp.ne.s32.totalorder %s76, %s78
      %p82 = scmp.eq.s32.totalorder %s16, 0
      %p83 = por %p81, %p82
      %p84 = scmp.ne.s32.totalorder %s76, %s78
      %p85 = scmp.eq.s32.totalorder %s21, 1
      %p86 = por %p84, %p85
      %p87 = scmp.ne.s32.totalorder %s78, %s79
      %p88 = scmp.eq.s32.totalorder %s21, 0
      %p89 = por %p87, %p88
      %p90 = scmp.ne.s32.totalorder %s78, %s79
      %p91 = scmp.eq.s32.totalorder %s22, 1
      %p92 = por %p90, %p91
      %p94 = scmp.ne.s32.totalorder %s79, %s93
      %p95 = scmp.eq.s32.totalorder %s22, 0
      %p96 = por %p94, %p95
      %s98 = sadd.s32 %s97, 1
      %p101 = scmp.eq.s32.totalorder %s16, 1
      %p102 = scmp.ne.s32.totalorder %s97, %s99
      %p103 = scmp.eq.s32.totalorder %s16, 0
      %p104 = por %p102, %p103
      %p105 = scmp.ne.s32.totalorder %s97, %s99
      %p106 = scmp.eq.s32.totalorder %s21, 1
      %p107 = por %p105, %p106
      %p108 = scmp.ne.s32.totalorder %s99, %s100
      %p109 = scmp.eq.s32.totalorder %s21, 0
      %p110 = por %p108, %p109
      %p111 = scmp.ne.s32.totalorder %s99, %s100
      %p112 = scmp.eq.s32.totalorder %s22, 1
      %p113 = por %p111, %p112
      %p115 = scmp.ne.s32.totalorder %s100, %s114
      %p116 = scmp.eq.s32.totalorder %s22, 0
      %p117 = por %p115, %p116
      %s118 = ssub.s32 %s16, %s23
      %p119 = scmp.eq.s32.totalorder %s118, 0
      %s121 = sadd.s32 %s120, 1
      %s122 = scalar_select %p119, %s120, %s121
      %p125 = pneg %p119
      %p126 = scmp.eq.s32.totalorder %s16, 1
      %p127 = por %p125, %p126
      %p128 = scmp.ne.s32.totalorder %s120, %s123
      %p129 = scmp.eq.s32.totalorder %s16, 0
      %p130 = por %p128, %p129
      %p131 = scmp.ne.s32.totalorder %s120, %s123
      %p132 = scmp.eq.s32.totalorder %s21, 1
      %p133 = por %p131, %p132
      %p134 = scmp.ne.s32.totalorder %s123, %s124
      %p135 = scmp.eq.s32.totalorder %s21, 0
      %p136 = por %p134, %p135
      %p137 = scmp.ne.s32.totalorder %s123, %s124
      %p138 = scmp.eq.s32.totalorder %s22, 1
      %p139 = por %p137, %p138
      %p141 = scmp.ne.s32.totalorder %s124, %s140
      %p142 = scmp.eq.s32.totalorder %s22, 0
      %p143 = por %p141, %p142
      %p144 = scmp.le.s32.totalorder 1, %s16
      %p145 = scmp.lt.s32.totalorder %s16, 3
      %p146 = pnand %p144, %p145
      %p147 = pneg %p146
      // Predicated region
      $region9: #{ssim_loss.1} parent=5 // pred_check
        _
      $region10: #{ssim_loss.1} parent=5 // pred_check_branch
        %149 = sbr.rel (%p146) target = $region12
      $region11: #{ssim_loss.1} parent=5 // pred_region
        %s150 = ssub.s32 %s16, 1
        // Predicated region
        $region13: #{ssim_loss.1} parent=11 // pred_check
          %p151 = pneg %p89
        $region14: #{ssim_loss.1} parent=11 // pred_check_branch
          %153 = sbr.rel (%p151) target = $region16
        $region15: #{ssim_loss.1} parent=11 // pred_region
          %s155 = ssub.s32 1024, 1024
          %156 = vsyncadd [#allocation5], %s155
          %s157 = sshll.u32 [#allocation6], 4
          %s158 = int_to_ptr.vmem [resolvable:$true] %s157
          %163 = dma.hbm_to_vmem [thread:$0]  %s2, 1024, %s158, [#allocation5], 128, 128, 8
        $region16: #{ssim_loss.1} parent=11 // pred_fallthru
          _
        // Predicated region
        $region17: #{ssim_loss.1} parent=11 // pred_check
          %p164 = pneg %p110
        $region18: #{ssim_loss.1} parent=11 // pred_check_branch
          %166 = sbr.rel (%p164) target = $region20
        $region19: #{ssim_loss.1} parent=11 // pred_region
          _
        $region20: #{ssim_loss.1} parent=11 // pred_fallthru
          _
      $region12: #{ssim_loss.1} parent=5 // pred_fallthru
        _
      %p167 = scmp.lt.s32.totalorder %s16, 2
      // Predicated region
      $region21: #{ssim_loss.1} parent=5 // pred_check
        %p168 = pneg %p167
      $region22: #{ssim_loss.1} parent=5 // pred_check_branch
        %170 = sbr.rel (%p168) target = $region24
      $region23: #{ssim_loss.1} parent=5 // pred_region
        // Predicated region
        $region25: #{ssim_loss.1} parent=23 // pred_check
          %p171 = pneg %p36
        $region26: #{ssim_loss.1} parent=23 // pred_check_branch
          %173 = sbr.rel (%p171) target = $region28
        $region27: #{ssim_loss.1} parent=23 // pred_region
          %s174 = sand.u32 %s26, 1
          %s175 = scalar_lea.sflag [#allocation3], %s174
          %s176 = sand.u32 %s26, 1
          %s177 = smul.addr %s176, 64
          %s178 = scalar_lea.vmem [#allocation2], %s177
          %s180 = ssub.s32 1024, 1024
          %181 = vsyncadd %s175, %s180
          %s182 = smul.addr %s16, 8
          %s183 = smul.addr %s182, 128
          %s184 = scalar_lea.hbm %s0, %s183
          %s185 = sshll.u32 %s178, 4
          %s186 = int_to_ptr.vmem [resolvable:$true] %s185
          %191 = dma.hbm_to_vmem [thread:$0]  %s184, 1024, %s186, %s175, 128, 128, 8
        $region28: #{ssim_loss.1} parent=23 // pred_fallthru
          _
        // Predicated region
        $region29: #{ssim_loss.1} parent=23 // pred_check
          %p192 = pneg %p62
        $region30: #{ssim_loss.1} parent=23 // pred_check_branch
          %194 = sbr.rel (%p192) target = $region32
        $region31: #{ssim_loss.1} parent=23 // pred_region
          %s195 = sand.u32 %s16, 1
          %s196 = scalar_lea.sflag [#allocation5], %s195
          %s197 = sand.u32 %s52, 1
          %s198 = smul.addr %s197, 64
          %s199 = scalar_lea.vmem [#allocation4], %s198
          %s201 = ssub.s32 1024, 1024
          %202 = vsyncadd %s196, %s201
          %s203 = smul.addr %s16, 8
          %s204 = smul.addr %s203, 128
          %s205 = scalar_lea.hbm %s1, %s204
          %s206 = sshll.u32 %s199, 4
          %s207 = int_to_ptr.vmem [resolvable:$true] %s206
          %212 = dma.hbm_to_vmem [thread:$0]  %s205, 1024, %s207, %s196, 128, 128, 8
        $region32: #{ssim_loss.1} parent=23 // pred_fallthru
          _
      $region24: #{ssim_loss.1} parent=5 // pred_fallthru
        _
      %p213 = scmp.le.s32.totalorder 1, %s16
      %p214 = scmp.lt.s32.totalorder %s16, 3
      %p215 = pnand %p213, %p214
      %p216 = pneg %p215
      // Predicated region
      $region33: #{ssim_loss.1} parent=5 // pred_check
        _
      $region34: #{ssim_loss.1} parent=5 // pred_check_branch
        %218 = sbr.rel (%p215) target = $region36
      $region35: #{ssim_loss.1} parent=5 // pred_region
        %s219 = ssub.s32 %s16, 1
        %s220 = sand.u32 %s29, 1
        %s221 = scalar_lea.sflag [#allocation3], %s220
        %s222 = sand.u32 %s29, 1
        %s223 = smul.addr %s222, 64
        %s224 = scalar_lea.vmem [#allocation2], %s223
        // Predicated region
        $region37: #{ssim_loss.1} parent=35 // pred_check
          %p225 = pneg %p42
        $region38: #{ssim_loss.1} parent=35 // pred_check_branch
          %227 = sbr.rel (%p225) target = $region40
        $region39: #{ssim_loss.1} parent=35 // pred_region
          %228 = dma.done %s221, 1024
        $region40: #{ssim_loss.1} parent=35 // pred_fallthru
          _
        %s229 = sand.u32 %s21, 1
        %s230 = scalar_lea.sflag [#allocation5], %s229
        %s231 = sand.u32 %s55, 1
        %s232 = smul.addr %s231, 64
        %s233 = scalar_lea.vmem [#allocation4], %s232
        // Predicated region
        $region41: #{ssim_loss.1} parent=35 // pred_check
          %p234 = pneg %p68
        $region42: #{ssim_loss.1} parent=35 // pred_check_branch
          %236 = sbr.rel (%p234) target = $region44
        $region43: #{ssim_loss.1} parent=35 // pred_region
          %237 = dma.done %s230, 1024
        $region44: #{ssim_loss.1} parent=35 // pred_fallthru
          _
        // Predicated region
        $region45: #{ssim_loss.1} parent=35 // pred_check
          %p238 = pneg %p89
        $region46: #{ssim_loss.1} parent=35 // pred_check_branch
          %240 = sbr.rel (%p238) target = $region48
        $region47: #{ssim_loss.1} parent=35 // pred_region
          %241 = dma.done [#allocation5], 1024
        $region48: #{ssim_loss.1} parent=35 // pred_fallthru
          _
        %s242 = sand.u32 %s29, 1
        %s243 = scalar_lea.sflag [#allocation3], %s242
        %s244 = sand.u32 %s29, 1
        %s245 = smul.addr %s244, 64
        %s246 = scalar_lea.vmem [#allocation2], %s245
        %p247 = pneg %p42
        %p248 = pneg %p39
        %s249 = sand.u32 %s21, 1
        %s250 = scalar_lea.sflag [#allocation5], %s249
        %s251 = sand.u32 %s55, 1
        %s252 = smul.addr %s251, 64
        %s253 = scalar_lea.vmem [#allocation4], %s252
        %p254 = pneg %p68
        %p255 = pneg %p65
        %p256 = pneg %p89
        %p257 = pneg %p86
        %p258 = pneg %p110
        %p259 = pneg %p107
        %p260 = pneg %p136
        %p261 = pneg %p133
        %p262 = scmp.lt.s32.totalorder %s21, 1
        %s263 = scalar_select %p262, %s21, 1
        %s264 = scalar_lea.vmem %s4, %s263
        %p265 = scmp.lt.s32.totalorder %s21, 1
        %s266 = scalar_select %p265, %s21, 1
        %s267 = scalar_lea.vmem %s4, %s266
        %v268 = vld [vmem:[%s224] sm:$0xff]
        %v269 = vld [vmem:[%s224 + $0x8] sm:$0xff]
        %v270 = vld [vmem:[%s224 + $0x10] sm:$0xff]
        %v271 = vld [vmem:[%s224 + $0x18] sm:$0xff]
        %v272 = vld [vmem:[%s224 + $0x20] sm:$0xff]
        %v273 = vld [vmem:[%s224 + $0x28] sm:$0xff]
        %v274 = vld [vmem:[%s224 + $0x30] sm:$0xff]
        %v275 = vld [vmem:[%s224 + $0x38] sm:$0xff]
        %v276 = vmul.f32 %v268, 127.5
        %v277 = vmul.f32 %v269, 127.5
        %v278 = vmul.f32 %v270, 127.5
        %v279 = vmul.f32 %v271, 127.5
        %v280 = vmul.f32 %v272, 127.5
        %v281 = vmul.f32 %v273, 127.5
        %v282 = vmul.f32 %v274, 127.5
        %v283 = vmul.f32 %v275, 127.5
        %v284 = vadd.f32 %v276, 127.5
        %v285 = vadd.f32 %v277, 127.5
        %v286 = vadd.f32 %v278, 127.5
        %v287 = vadd.f32 %v279, 127.5
        %v288 = vadd.f32 %v280, 127.5
        %v289 = vadd.f32 %v281, 127.5
        %v290 = vadd.f32 %v282, 127.5
        %v291 = vadd.f32 %v283, 127.5
        %v292 = vld [vmem:[%s233] sm:$0xff]
        %v293 = vld [vmem:[%s233 + $0x8] sm:$0xff]
        %v294 = vld [vmem:[%s233 + $0x10] sm:$0xff]
        %v295 = vld [vmem:[%s233 + $0x18] sm:$0xff]
        %v296 = vld [vmem:[%s233 + $0x20] sm:$0xff]
        %v297 = vld [vmem:[%s233 + $0x28] sm:$0xff]
        %v298 = vld [vmem:[%s233 + $0x30] sm:$0xff]
        %v299 = vld [vmem:[%s233 + $0x38] sm:$0xff]
        %v300 = vmul.f32 %v292, 127.5
        %v301 = vmul.f32 %v293, 127.5
        %v302 = vmul.f32 %v294, 127.5
        %v303 = vmul.f32 %v295, 127.5
        %v304 = vmul.f32 %v296, 127.5
        %v305 = vmul.f32 %v297, 127.5
        %v306 = vmul.f32 %v298, 127.5
        %v307 = vmul.f32 %v299, 127.5
        %v308 = vadd.f32 %v300, 127.5
        %v309 = vadd.f32 %v301, 127.5
        %v310 = vadd.f32 %v302, 127.5
        %v311 = vadd.f32 %v303, 127.5
        %v312 = vadd.f32 %v304, 127.5
        %v313 = vadd.f32 %v305, 127.5
        %v314 = vadd.f32 %v306, 127.5
        %v315 = vadd.f32 %v307, 127.5
        %v316 = vld [vmem:[#allocation6] sm:$0xff]
        %v317 = vld [vmem:[#allocation6 + $0x8] sm:$0xff]
        %v318 = vld [vmem:[#allocation6 + $0x10] sm:$0xff]
        %v319 = vld [vmem:[#allocation6 + $0x18] sm:$0xff]
        %v320 = vld [vmem:[#allocation6 + $0x20] sm:$0xff]
        %v321 = vld [vmem:[#allocation6 + $0x28] sm:$0xff]
        %v322 = vld [vmem:[#allocation6 + $0x30] sm:$0xff]
        %v323 = vld [vmem:[#allocation6 + $0x38] sm:$0xff]
        %v324 = vld [vmem:[%s3] sm:$0xff]
        %v325 = vld [vmem:[%s3 + $0x8] sm:$0xff]
        %vm326 = vcmask 523264
        %v328 = vsel %vm326, %v316, 0
        %v331 = vsel %vm326, %v317, 0
        %v334 = vsel %vm326, %v318, 0
        %v337 = vsel %vm326, %v319, 0
        %v340 = vsel %vm326, %v320, 0
        %v343 = vsel %vm326, %v321, 0
        %v346 = vsel %vm326, %v322, 0
        %v349 = vsel %vm326, %v323, 0
        %351 = vmatprep.subr.mxu0 0.0
        %352 = vmatpush1.msra.mxu0 %v284
        %353 = vmatprep.subr.mxu0 0.0
        %354 = vmatpush1.msra.mxu0 %v285
        %355 = vmatprep.subr.mxu0 0.0
        %356 = vmatpush1.msra.mxu0 %v286
        %357 = vmatprep.subr.mxu0 0.0
        %358 = vmatpush1.msra.mxu0 %v287
        %359 = vmatprep.subr.mxu0 0.0
        %360 = vmatpush1.msra.mxu0 %v288
        %361 = vmatprep.subr.mxu0 0.0
        %362 = vmatpush1.msra.mxu0 %v289
        %363 = vmatprep.subr.mxu0 0.0
        %364 = vmatpush1.msra.mxu0 %v290
        %365 = vmatprep.subr.mxu0 0.0
        %366 = vmatpush1.msra.mxu0 %v291
        %367 = vmatprep.subr.mxu0 0.0
        %368 = vmatpush1.msra.mxu0 0.0
        %369 = vmatprep.subr.mxu0 0.0
        %370 = vmatpush1.msra.mxu0 0.0
        %371 = vmatprep.subr.mxu0 0.0
        %372 = vmatpush1.msra.mxu0 0.0
        %373 = vmatprep.subr.mxu0 0.0
        %374 = vmatpush1.msra.mxu0 0.0
        %375 = vmatprep.subr.mxu0 0.0
        %376 = vmatpush1.msra.mxu0 0.0
        %377 = vmatprep.subr.mxu0 0.0
        %378 = vmatpush1.msra.mxu0 0.0
        %379 = vmatprep.subr.mxu0 0.0
        %380 = vmatpush1.msra.mxu0 0.0
        %381 = vmatprep.subr.mxu0 0.0
        %382 = vmatpush1.msra.mxu0 0.0
        %383 = vmatprep.subr.mxu0 0.0
        %384 = vmatpush1.msra.mxu0 0.0
        %385 = vmatprep.subr.mxu0 0.0
        %386 = vmatpush1.msra.mxu0 0.0
        %387 = vmatprep.subr.mxu0 0.0
        %388 = vmatpush1.msra.mxu0 0.0
        %389 = vmatprep.subr.mxu0 0.0
        %390 = vmatpush1.msra.mxu0 0.0
        %391 = vmatprep.subr.mxu0 0.0
        %392 = vmatpush1.msra.mxu0 0.0
        %393 = vmatprep.subr.mxu0 0.0
        %394 = vmatpush1.msra.mxu0 0.0
        %395 = vmatprep.subr.mxu0 0.0
        %396 = vmatpush1.msra.mxu0 0.0
        %397 = vmatprep.subr.mxu0 0.0
        %398 = vmatpush1.msra.mxu0 0.0
        %399 = vmatprep.subr.mxu0 0.0
        %400 = vmatpush1.msra.mxu0 0.0
        %401 = vmatprep.subr.mxu0 0.0
        %402 = vmatpush1.msra.mxu0 0.0
        %403 = vmatprep.subr.mxu0 0.0
        %404 = vmatpush1.msra.mxu0 0.0
        %405 = vmatprep.subr.mxu0 0.0
        %406 = vmatpush1.msra.mxu0 0.0
        %407 = vmatprep.subr.mxu0 0.0
        %408 = vmatpush1.msra.mxu0 0.0
        %409 = vmatprep.subr.mxu0 0.0
        %410 = vmatpush1.msra.mxu0 0.0
        %411 = vmatprep.subr.mxu0 0.0
        %412 = vmatpush1.msra.mxu0 0.0
        %413 = vmatprep.subr.mxu0 0.0
        %414 = vmatpush1.msra.mxu0 0.0
        %415 = vmatprep.mubr.f32.mxu0 0.0
        %416 = vmatmul.mubr.f32.gmra.mrb[0].mxu0 %v328
        %v417 = vpop.f32.mrb[0].mxu0
        %v418 = vadd.f32 0.0, %v417
        %v419 = vpop.f32.mrb[0].mxu0
        %420 = vmatprep.mubr.f32.mxu0 0.0
        %421 = vmatmul.mubr.f32.gmra.mrb[0].mxu0 %v331
        %v422 = vpop.f32.mrb[0].mxu0
        %v423 = vadd.f32 0.0, %v422
        %v424 = vpop.f32.mrb[0].mxu0
        %425 = vmatprep.mubr.f32.mxu0 0.0
        %426 = vmatmul.mubr.f32.gmra.mrb[0].mxu0 %v334
        %v427 = vpop.f32.mrb[0].mxu0
        %v428 = vadd.f32 0.0, %v427
        %v429 = vpop.f32.mrb[0].mxu0
        %430 = vmatprep.mubr.f32.mxu0 0.0
        %431 = vmatmul.mubr.f32.gmra.mrb[0].mxu0 %v337
        %v432 = vpop.f32.mrb[0].mxu0
        %v433 = vadd.f32 0.0, %v432
        %v434 = vpop.f32.mrb[0].mxu0
        %435 = vmatprep.mubr.f32.mxu0 0.0
        %436 = vmatmul.mubr.f32.gmra.mrb[0].mxu0 %v340
        %v437 = vpop.f32.mrb[0].mxu0
        %v438 = vadd.f32 0.0, %v437
        %v439 = vpop.f32.mrb[0].mxu0
        %440 = vmatprep.mubr.f32.mxu0 0.0
        %441 = vmatmul.mubr.f32.gmra.mrb[0].mxu0 %v343
        %v442 = vpop.f32.mrb[0].mxu0
        %v443 = vadd.f32 0.0, %v442
        %v444 = vpop.f32.mrb[0].mxu0
        %445 = vmatprep.mubr.f32.mxu0 0.0
        %446 = vmatmul.mubr.f32.gmra.mrb[0].mxu0 %v346
        %v447 = vpop.f32.mrb[0].mxu0
        %v448 = vadd.f32 0.0, %v447
        %v449 = vpop.f32.mrb[0].mxu0
        %450 = vmatprep.mubr.f32.mxu0 0.0
        %451 = vmatmul.mubr.f32.gmra.mrb[0].mxu0 %v349
        %v452 = vpop.f32.mrb[0].mxu0
        %v453 = vadd.f32 0.0, %v452
        %v454 = vpop.f32.mrb[0].mxu0
        %455 = vdwg.mxu0
        %vm456 = vcmask 130048
        %v458 = vsel %vm456, %v418, 0
        %v461 = vsel %vm456, %v423, 0
        %v464 = vsel %vm456, %v428, 0
        %v467 = vsel %vm456, %v433, 0
        %v470 = vsel %vm456, %v438, 0
        %v473 = vsel %vm456, %v443, 0
        %v476 = vsel %vm456, %v448, 0
        %v479 = vsel %vm456, %v453, 0
        %481 = vmatprep.subr.mxu0 0.0
        %482 = vmatpush1.msra.mxu0 %v324
        %483 = vmatprep.subr.mxu0 0.0
        %484 = vmatpush1.msra.mxu0 %v325
        %485 = vmatprep.subr.mxu0 0.0
        %486 = vmatpush1.msra.mxu0 0.0
        %487 = vmatprep.subr.mxu0 0.0
        %488 = vmatpush1.msra.mxu0 0.0
        %489 = vmatprep.subr.mxu0 0.0
        %490 = vmatpush1.msra.mxu0 0.0
        %491 = vmatprep.subr.mxu0 0.0
        %492 = vmatpush1.msra.mxu0 0.0
        %493 = vmatprep.subr.mxu0 0.0
        %494 = vmatpush1.msra.mxu0 0.0
        %495 = vmatprep.subr.mxu0 0.0
        %496 = vmatpush1.msra.mxu0 0.0
        %497 = vmatprep.subr.mxu0 0.0
        %498 = vmatpush1.msra.mxu0 0.0
        %499 = vmatprep.subr.mxu0 0.0
        %500 = vmatpush1.msra.mxu0 0.0
        %501 = vmatprep.subr.mxu0 0.0
        %502 = vmatpush1.msra.mxu0 0.0
        %503 = vmatprep.subr.mxu0 0.0
        %504 = vmatpush1.msra.mxu0 0.0
        %505 = vmatprep.subr.mxu0 0.0
        %506 = vmatpush1.msra.mxu0 0.0
        %507 = vmatprep.subr.mxu0 0.0
        %508 = vmatpush1.msra.mxu0 0.0
        %509 = vmatprep.subr.mxu0 0.0
        %510 = vmatpush1.msra.mxu0 0.0
        %511 = vmatprep.subr.mxu0 0.0
        %512 = vmatpush1.msra.mxu0 0.0
        %513 = vmatprep.subr.mxu0 0.0
        %514 = vmatpush1.msra.mxu0 0.0
        %515 = vmatprep.subr.mxu0 0.0
        %516 = vmatpush1.msra.mxu0 0.0
        %517 = vmatprep.subr.mxu0 0.0
        %518 = vmatpush1.msra.mxu0 0.0
        %519 = vmatprep.subr.mxu0 0.0
        %520 = vmatpush1.msra.mxu0 0.0
        %521 = vmatprep.subr.mxu0 0.0
        %522 = vmatpush1.msra.mxu0 0.0
        %523 = vmatprep.subr.mxu0 0.0
        %524 = vmatpush1.msra.mxu0 0.0
        %525 = vmatprep.subr.mxu0 0.0
        %526 = vmatpush1.msra.mxu0 0.0
        %527 = vmatprep.subr.mxu0 0.0
        %528 = vmatpush1.msra.mxu0 0.0
        %529 = vmatprep.subr.mxu0 0.0
        %530 = vmatpush1.msra.mxu0 0.0
        %531 = vmatprep.subr.mxu0 0.0
        %532 = vmatpush1.msra.mxu0 0.0
        %533 = vmatprep.subr.mxu0 0.0
        %534 = vmatpush1.msra.mxu0 0.0
        %535 = vmatprep.subr.mxu0 0.0
        %536 = vmatpush1.msra.mxu0 0.0
        %537 = vmatprep.subr.mxu0 0.0
        %538 = vmatpush1.msra.mxu0 0.0
        %539 = vmatprep.subr.mxu0 0.0
        %540 = vmatpush1.msra.mxu0 0.0
        %541 = vmatprep.subr.mxu0 0.0
        %542 = vmatpush1.msra.mxu0 0.0
        %543 = vmatprep.subr.mxu0 0.0
        %544 = vmatpush1.msra.mxu0 0.0
        %545 = vmatprep.mubr.f32.mxu0 0.0
        %546 = vmatmul.mubr.f32.gmra.mrb[0].mxu0 %v458
        %v547 = vpop.f32.mrb[0].mxu0
        %v548 = vadd.f32 0.0, %v547
        %v549 = vpop.f32.mrb[0].mxu0
        %550 = vmatprep.mubr.f32.mxu0 0.0
        %551 = vmatmul.mubr.f32.gmra.mrb[0].mxu0 %v461
        %v552 = vpop.f32.mrb[0].mxu0
        %v553 = vadd.f32 0.0, %v552
        %v554 = vpop.f32.mrb[0].mxu0
        %555 = vmatprep.mubr.f32.mxu0 0.0
        %556 = vmatmul.mubr.f32.gmra.mrb[0].mxu0 %v464
        %v557 = vpop.f32.mrb[0].mxu0
        %v558 = vadd.f32 0.0, %v557
        %v559 = vpop.f32.mrb[0].mxu0
        %560 = vmatprep.mubr.f32.mxu0 0.0
        %561 = vmatmul.mubr.f32.gmra.mrb[0].mxu0 %v467
        %v562 = vpop.f32.mrb[0].mxu0
        %v563 = vadd.f32 0.0, %v562
        %v564 = vpop.f32.mrb[0].mxu0
        %565 = vmatprep.mubr.f32.mxu0 0.0
        %566 = vmatmul.mubr.f32.gmra.mrb[0].mxu0 %v470
        %v567 = vpop.f32.mrb[0].mxu0
        %v568 = vadd.f32 0.0, %v567
        %v569 = vpop.f32.mrb[0].mxu0
        %570 = vmatprep.mubr.f32.mxu0 0.0
        %571 = vmatmul.mubr.f32.gmra.mrb[0].mxu0 %v473
        %v572 = vpop.f32.mrb[0].mxu0
        %v573 = vadd.f32 0.0, %v572
        %v574 = vpop.f32.mrb[0].mxu0
        %575 = vmatprep.mubr.f32.mxu0 0.0
        %576 = vmatmul.mubr.f32.gmra.mrb[0].mxu0 %v476
        %v577 = vpop.f32.mrb[0].mxu0
        %v578 = vadd.f32 0.0, %v577
        %v579 = vpop.f32.mrb[0].mxu0
        %580 = vmatprep.mubr.f32.mxu0 0.0
        %581 = vmatmul.mubr.f32.gmra.mrb[0].mxu0 %v479
        %v582 = vpop.f32.mrb[0].mxu0
        %v583 = vadd.f32 0.0, %v582
        %v584 = vpop.f32.mrb[0].mxu0
        %585 = vdwg.mxu0
        %586 = vmatprep.subr.mxu0 0.0
        %587 = vmatpush1.msra.mxu0 %v308
        %588 = vmatprep.subr.mxu0 0.0
        %589 = vmatpush1.msra.mxu0 %v309
        %590 = vmatprep.subr.mxu0 0.0
        %591 = vmatpush1.msra.mxu0 %v310
        %592 = vmatprep.subr.mxu0 0.0
        %593 = vmatpush1.msra.mxu0 %v311
        %594 = vmatprep.subr.mxu0 0.0
        %595 = vmatpush1.msra.mxu0 %v312
        %596 = vmatprep.subr.mxu0 0.0
        %597 = vmatpush1.msra.mxu0 %v313
        %598 = vmatprep.subr.mxu0 0.0
        %599 = vmatpush1.msra.mxu0 %v314
        %600 = vmatprep.subr.mxu0 0.0
        %601 = vmatpush1.msra.mxu0 %v315
        %602 = vmatprep.subr.mxu0 0.0
        %603 = vmatpush1.msra.mxu0 0.0
        %604 = vmatprep.subr.mxu0 0.0
        %605 = vmatpush1.msra.mxu0 0.0
        %606 = vmatprep.subr.mxu0 0.0
        %607 = vmatpush1.msra.mxu0 0.0
        %608 = vmatprep.subr.mxu0 0.0
        %609 = vmatpush1.msra.mxu0 0.0
        %610 = vmatprep.subr.mxu0 0.0
        %611 = vmatpush1.msra.mxu0 0.0
        %612 = vmatprep.subr.mxu0 0.0
        %613 = vmatpush1.msra.mxu0 0.0
        %614 = vmatprep.subr.mxu0 0.0
        %615 = vmatpush1.msra.mxu0 0.0
        %616 = vmatprep.subr.mxu0 0.0
        %617 = vmatpush1.msra.mxu0 0.0
        %618 = vmatprep.subr.mxu0 0.0
        %619 = vmatpush1.msra.mxu0 0.0
        %620 = vmatprep.subr.mxu0 0.0
        %621 = vmatpush1.msra.mxu0 0.0
        %622 = vmatprep.subr.mxu0 0.0
        %623 = vmatpush1.msra.mxu0 0.0
        %624 = vmatprep.subr.mxu0 0.0
        %625 = vmatpush1.msra.mxu0 0.0
        %626 = vmatprep.subr.mxu0 0.0
        %627 = vmatpush1.msra.mxu0 0.0
        %628 = vmatprep.subr.mxu0 0.0
        %629 = vmatpush1.msra.mxu0 0.0
        %630 = vmatprep.subr.mxu0 0.0
        %631 = vmatpush1.msra.mxu0 0.0
        %632 = vmatprep.subr.mxu0 0.0
        %633 = vmatpush1.msra.mxu0 0.0
        %634 = vmatprep.subr.mxu0 0.0
        %635 = vmatpush1.msra.mxu0 0.0
        %636 = vmatprep.subr.mxu0 0.0
        %637 = vmatpush1.msra.mxu0 0.0
        %638 = vmatprep.subr.mxu0 0.0
        %639 = vmatpush1.msra.mxu0 0.0
        %640 = vmatprep.subr.mxu0 0.0
        %641 = vmatpush1.msra.mxu0 0.0
        %642 = vmatprep.subr.mxu0 0.0
        %643 = vmatpush1.msra.mxu0 0.0
        %644 = vmatprep.subr.mxu0 0.0
        %645 = vmatpush1.msra.mxu0 0.0
        %646 = vmatprep.subr.mxu0 0.0
        %647 = vmatpush1.msra.mxu0 0.0
        %648 = vmatprep.subr.mxu0 0.0
        %649 = vmatpush1.msra.mxu0 0.0
        %650 = vmatprep.mubr.f32.mxu0 0.0
        %651 = vmatmul.mubr.f32.gmra.mrb[0].mxu0 %v328
        %v652 = vpop.f32.mrb[0].mxu0
        %v653 = vadd.f32 0.0, %v652
        %v654 = vpop.f32.mrb[0].mxu0
        %655 = vmatprep.mubr.f32.mxu0 0.0
        %656 = vmatmul.mubr.f32.gmra.mrb[0].mxu0 %v331
        %v657 = vpop.f32.mrb[0].mxu0
        %v658 = vadd.f32 0.0, %v657
        %v659 = vpop.f32.mrb[0].mxu0
        %660 = vmatprep.mubr.f32.mxu0 0.0
        %661 = vmatmul.mubr.f32.gmra.mrb[0].mxu0 %v334
        %v662 = vpop.f32.mrb[0].mxu0
        %v663 = vadd.f32 0.0, %v662
        %v664 = vpop.f32.mrb[0].mxu0
        %665 = vmatprep.mubr.f32.mxu0 0.0
        %666 = vmatmul.mubr.f32.gmra.mrb[0].mxu0 %v337
        %v667 = vpop.f32.mrb[0].mxu0
        %v668 = vadd.f32 0.0, %v667
        %v669 = vpop.f32.mrb[0].mxu0
        %670 = vmatprep.mubr.f32.mxu0 0.0
        %671 = vmatmul.mubr.f32.gmra.mrb[0].mxu0 %v340
        %v672 = vpop.f32.mrb[0].mxu0
        %v673 = vadd.f32 0.0, %v672
        %v674 = vpop.f32.mrb[0].mxu0
        %675 = vmatprep.mubr.f32.mxu0 0.0
        %676 = vmatmul.mubr.f32.gmra.mrb[0].mxu0 %v343
        %v677 = vpop.f32.mrb[0].mxu0
        %v678 = vadd.f32 0.0, %v677
        %v679 = vpop.f32.mrb[0].mxu0
        %680 = vmatprep.mubr.f32.mxu0 0.0
        %681 = vmatmul.mubr.f32.gmra.mrb[0].mxu0 %v346
        %v682 = vpop.f32.mrb[0].mxu0
        %v683 = vadd.f32 0.0, %v682
        %v684 = vpop.f32.mrb[0].mxu0
        %685 = vmatprep.mubr.f32.mxu0 0.0
        %686 = vmatmul.mubr.f32.gmra.mrb[0].mxu0 %v349
        %v687 = vpop.f32.mrb[0].mxu0
        %v688 = vadd.f32 0.0, %v687
        %v689 = vpop.f32.mrb[0].mxu0
        %690 = vdwg.mxu0
        %v692 = vsel %vm456, %v653, 0
        %v695 = vsel %vm456, %v658, 0
        %v698 = vsel %vm456, %v663, 0
        %v701 = vsel %vm456, %v668, 0
        %v704 = vsel %vm456, %v673, 0
        %v707 = vsel %vm456, %v678, 0
        %v710 = vsel %vm456, %v683, 0
        %v713 = vsel %vm456, %v688, 0
        %715 = vmatprep.subr.mxu0 0.0
        %716 = vmatpush1.msra.mxu0 %v324
        %717 = vmatprep.subr.mxu0 0.0
        %718 = vmatpush1.msra.mxu0 %v325
        %719 = vmatprep.subr.mxu0 0.0
        %720 = vmatpush1.msra.mxu0 0.0
        %721 = vmatprep.subr.mxu0 0.0
        %722 = vmatpush1.msra.mxu0 0.0
        %723 = vmatprep.subr.mxu0 0.0
        %724 = vmatpush1.msra.mxu0 0.0
        %725 = vmatprep.subr.mxu0 0.0
        %726 = vmatpush1.msra.mxu0 0.0
        %727 = vmatprep.subr.mxu0 0.0
        %728 = vmatpush1.msra.mxu0 0.0
        %729 = vmatprep.subr.mxu0 0.0
        %730 = vmatpush1.msra.mxu0 0.0
        %731 = vmatprep.subr.mxu0 0.0
        %732 = vmatpush1.msra.mxu0 0.0
        %733 = vmatprep.subr.mxu0 0.0
        %734 = vmatpush1.msra.mxu0 0.0
        %735 = vmatprep.subr.mxu0 0.0
        %736 = vmatpush1.msra.mxu0 0.0
        %737 = vmatprep.subr.mxu0 0.0
        %738 = vmatpush1.msra.mxu0 0.0
        %739 = vmatprep.subr.mxu0 0.0
        %740 = vmatpush1.msra.mxu0 0.0
        %741 = vmatprep.subr.mxu0 0.0
        %742 = vmatpush1.msra.mxu0 0.0
        %743 = vmatprep.subr.mxu0 0.0
        %744 = vmatpush1.msra.mxu0 0.0
        %745 = vmatprep.subr.mxu0 0.0
        %746 = vmatpush1.msra.mxu0 0.0
        %747 = vmatprep.subr.mxu0 0.0
        %748 = vmatpush1.msra.mxu0 0.0
        %749 = vmatprep.subr.mxu0 0.0
        %750 = vmatpush1.msra.mxu0 0.0
        %751 = vmatprep.subr.mxu0 0.0
        %752 = vmatpush1.msra.mxu0 0.0
        %753 = vmatprep.subr.mxu0 0.0
        %754 = vmatpush1.msra.mxu0 0.0
        %755 = vmatprep.subr.mxu0 0.0
        %756 = vmatpush1.msra.mxu0 0.0
        %757 = vmatprep.subr.mxu0 0.0
        %758 = vmatpush1.msra.mxu0 0.0
        %759 = vmatprep.subr.mxu0 0.0
        %760 = vmatpush1.msra.mxu0 0.0
        %761 = vmatprep.subr.mxu0 0.0
        %762 = vmatpush1.msra.mxu0 0.0
        %763 = vmatprep.subr.mxu0 0.0
        %764 = vmatpush1.msra.mxu0 0.0
        %765 = vmatprep.subr.mxu0 0.0
        %766 = vmatpush1.msra.mxu0 0.0
        %767 = vmatprep.subr.mxu0 0.0
        %768 = vmatpush1.msra.mxu0 0.0
        %769 = vmatprep.subr.mxu0 0.0
        %770 = vmatpush1.msra.mxu0 0.0
        %771 = vmatprep.subr.mxu0 0.0
        %772 = vmatpush1.msra.mxu0 0.0
        %773 = vmatprep.subr.mxu0 0.0
        %774 = vmatpush1.msra.mxu0 0.0
        %775 = vmatprep.subr.mxu0 0.0
        %776 = vmatpush1.msra.mxu0 0.0
        %777 = vmatprep.subr.mxu0 0.0
        %778 = vmatpush1.msra.mxu0 0.0
        %779 = vmatprep.mubr.f32.mxu0 0.0
        %780 = vmatmul.mubr.f32.gmra.mrb[0].mxu0 %v692
        %v781 = vpop.f32.mrb[0].mxu0
        %v782 = vadd.f32 0.0, %v781
        %v783 = vpop.f32.mrb[0].mxu0
        %784 = vmatprep.mubr.f32.mxu0 0.0
        %785 = vmatmul.mubr.f32.gmra.mrb[0].mxu0 %v695
        %v786 = vpop.f32.mrb[0].mxu0
        %v787 = vadd.f32 0.0, %v786
        %v788 = vpop.f32.mrb[0].mxu0
        %789 = vmatprep.mubr.f32.mxu0 0.0
        %790 = vmatmul.mubr.f32.gmra.mrb[0].mxu0 %v698
        %v791 = vpop.f32.mrb[0].mxu0
        %v792 = vadd.f32 0.0, %v791
        %v793 = vpop.f32.mrb[0].mxu0
        %794 = vmatprep.mubr.f32.mxu0 0.0
        %795 = vmatmul.mubr.f32.gmra.mrb[0].mxu0 %v701
        %v796 = vpop.f32.mrb[0].mxu0
        %v797 = vadd.f32 0.0, %v796
        %v798 = vpop.f32.mrb[0].mxu0
        %799 = vmatprep.mubr.f32.mxu0 0.0
        %800 = vmatmul.mubr.f32.gmra.mrb[0].mxu0 %v704
        %v801 = vpop.f32.mrb[0].mxu0
        %v802 = vadd.f32 0.0, %v801
        %v803 = vpop.f32.mrb[0].mxu0
        %804 = vmatprep.mubr.f32.mxu0 0.0
        %805 = vmatmul.mubr.f32.gmra.mrb[0].mxu0 %v707
        %v806 = vpop.f32.mrb[0].mxu0
        %v807 = vadd.f32 0.0, %v806
        %v808 = vpop.f32.mrb[0].mxu0
        %809 = vmatprep.mubr.f32.mxu0 0.0
        %810 = vmatmul.mubr.f32.gmra.mrb[0].mxu0 %v710
        %v811 = vpop.f32.mrb[0].mxu0
        %v812 = vadd.f32 0.0, %v811
        %v813 = vpop.f32.mrb[0].mxu0
        %814 = vmatprep.mubr.f32.mxu0 0.0
        %815 = vmatmul.mubr.f32.gmra.mrb[0].mxu0 %v713
        %v816 = vpop.f32.mrb[0].mxu0
        %v817 = vadd.f32 0.0, %v816
        %v818 = vpop.f32.mrb[0].mxu0
        %819 = vdwg.mxu0
        %v820 = vmul.f32 %v284, %v308
        %v821 = vmul.f32 %v285, %v309
        %v822 = vmul.f32 %v286, %v310
        %v823 = vmul.f32 %v287, %v311
        %v824 = vmul.f32 %v288, %v312
        %v825 = vmul.f32 %v289, %v313
        %v826 = vmul.f32 %v290, %v314
        %v827 = vmul.f32 %v291, %v315
        %828 = vmatprep.subr.mxu0 0.0
        %829 = vmatpush1.msra.mxu0 %v820
        %830 = vmatprep.subr.mxu0 0.0
        %831 = vmatpush1.msra.mxu0 %v821
        %832 = vmatprep.subr.mxu0 0.0
        %833 = vmatpush1.msra.mxu0 %v822
        %834 = vmatprep.subr.mxu0 0.0
        %835 = vmatpush1.msra.mxu0 %v823
        %836 = vmatprep.subr.mxu0 0.0
        %837 = vmatpush1.msra.mxu0 %v824
        %838 = vmatprep.subr.mxu0 0.0
        %839 = vmatpush1.msra.mxu0 %v825
        %840 = vmatprep.subr.mxu0 0.0
        %841 = vmatpush1.msra.mxu0 %v826
        %842 = vmatprep.subr.mxu0 0.0
        %843 = vmatpush1.msra.mxu0 %v827
        %844 = vmatprep.subr.mxu0 0.0
        %845 = vmatpush1.msra.mxu0 0.0
        %846 = vmatprep.subr.mxu0 0.0
        %847 = vmatpush1.msra.mxu0 0.0
        %848 = vmatprep.subr.mxu0 0.0
        %849 = vmatpush1.msra.mxu0 0.0
        %850 = vmatprep.subr.mxu0 0.0
        %851 = vmatpush1.msra.mxu0 0.0
        %852 = vmatprep.subr.mxu0 0.0
        %853 = vmatpush1.msra.mxu0 0.0
        %854 = vmatprep.subr.mxu0 0.0
        %855 = vmatpush1.msra.mxu0 0.0
        %856 = vmatprep.subr.mxu0 0.0
        %857 = vmatpush1.msra.mxu0 0.0
        %858 = vmatprep.subr.mxu0 0.0
        %859 = vmatpush1.msra.mxu0 0.0
        %860 = vmatprep.subr.mxu0 0.0
        %861 = vmatpush1.msra.mxu0 0.0
        %862 = vmatprep.subr.mxu0 0.0
        %863 = vmatpush1.msra.mxu0 0.0
        %864 = vmatprep.subr.mxu0 0.0
        %865 = vmatpush1.msra.mxu0 0.0
        %866 = vmatprep.subr.mxu0 0.0
        %867 = vmatpush1.msra.mxu0 0.0
        %868 = vmatprep.subr.mxu0 0.0
        %869 = vmatpush1.msra.mxu0 0.0
        %870 = vmatprep.subr.mxu0 0.0
        %871 = vmatpush1.msra.mxu0 0.0
        %872 = vmatprep.subr.mxu0 0.0
        %873 = vmatpush1.msra.mxu0 0.0
        %874 = vmatprep.subr.mxu0 0.0
        %875 = vmatpush1.msra.mxu0 0.0
        %876 = vmatprep.subr.mxu0 0.0
        %877 = vmatpush1.msra.mxu0 0.0
        %878 = vmatprep.subr.mxu0 0.0
        %879 = vmatpush1.msra.mxu0 0.0
        %880 = vmatprep.subr.mxu0 0.0
        %881 = vmatpush1.msra.mxu0 0.0
        %882 = vmatprep.subr.mxu0 0.0
        %883 = vmatpush1.msra.mxu0 0.0
        %884 = vmatprep.subr.mxu0 0.0
        %885 = vmatpush1.msra.mxu0 0.0
        %886 = vmatprep.subr.mxu0 0.0
        %887 = vmatpush1.msra.mxu0 0.0
        %888 = vmatprep.subr.mxu0 0.0
        %889 = vmatpush1.msra.mxu0 0.0
        %890 = vmatprep.subr.mxu0 0.0
        %891 = vmatpush1.msra.mxu0 0.0
        %892 = vmatprep.mubr.f32.mxu0 0.0
        %893 = vmatmul.mubr.f32.gmra.mrb[0].mxu0 %v328
        %v894 = vpop.f32.mrb[0].mxu0
        %v895 = vadd.f32 0.0, %v894
        %v896 = vpop.f32.mrb[0].mxu0
        %897 = vmatprep.mubr.f32.mxu0 0.0
        %898 = vmatmul.mubr.f32.gmra.mrb[0].mxu0 %v331
        %v899 = vpop.f32.mrb[0].mxu0
        %v900 = vadd.f32 0.0, %v899
        %v901 = vpop.f32.mrb[0].mxu0
        %902 = vmatprep.mubr.f32.mxu0 0.0
        %903 = vmatmul.mubr.f32.gmra.mrb[0].mxu0 %v334
        %v904 = vpop.f32.mrb[0].mxu0
        %v905 = vadd.f32 0.0, %v904
        %v906 = vpop.f32.mrb[0].mxu0
        %907 = vmatprep.mubr.f32.mxu0 0.0
        %908 = vmatmul.mubr.f32.gmra.mrb[0].mxu0 %v337
        %v909 = vpop.f32.mrb[0].mxu0
        %v910 = vadd.f32 0.0, %v909
        %v911 = vpop.f32.mrb[0].mxu0
        %912 = vmatprep.mubr.f32.mxu0 0.0
        %913 = vmatmul.mubr.f32.gmra.mrb[0].mxu0 %v340
        %v914 = vpop.f32.mrb[0].mxu0
        %v915 = vadd.f32 0.0, %v914
        %v916 = vpop.f32.mrb[0].mxu0
        %917 = vmatprep.mubr.f32.mxu0 0.0
        %918 = vmatmul.mubr.f32.gmra.mrb[0].mxu0 %v343
        %v919 = vpop.f32.mrb[0].mxu0
        %v920 = vadd.f32 0.0, %v919
        %v921 = vpop.f32.mrb[0].mxu0
        %922 = vmatprep.mubr.f32.mxu0 0.0
        %923 = vmatmul.mubr.f32.gmra.mrb[0].mxu0 %v346
        %v924 = vpop.f32.mrb[0].mxu0
        %v925 = vadd.f32 0.0, %v924
        %v926 = vpop.f32.mrb[0].mxu0
        %927 = vmatprep.mubr.f32.mxu0 0.0
        %928 = vmatmul.mubr.f32.gmra.mrb[0].mxu0 %v349
        %v929 = vpop.f32.mrb[0].mxu0
        %v930 = vadd.f32 0.0, %v929
        %v931 = vpop.f32.mrb[0].mxu0
        %932 = vdwg.mxu0
        %v934 = vsel %vm456, %v895, 0
        %v937 = vsel %vm456, %v900, 0
        %v940 = vsel %vm456, %v905, 0
        %v943 = vsel %vm456, %v910, 0
        %v946 = vsel %vm456, %v915, 0
        %v949 = vsel %vm456, %v920, 0
        %v952 = vsel %vm456, %v925, 0
        %v955 = vsel %vm456, %v930, 0
        %957 = vmatprep.subr.mxu0 0.0
        %958 = vmatpush1.msra.mxu0 %v324
        %959 = vmatprep.subr.mxu0 0.0
        %960 = vmatpush1.msra.mxu0 %v325
        %961 = vmatprep.subr.mxu0 0.0
        %962 = vmatpush1.msra.mxu0 0.0
        %963 = vmatprep.subr.mxu0 0.0
        %964 = vmatpush1.msra.mxu0 0.0
        %965 = vmatprep.subr.mxu0 0.0
        %966 = vmatpush1.msra.mxu0 0.0
        %967 = vmatprep.subr.mxu0 0.0
        %968 = vmatpush1.msra.mxu0 0.0
        %969 = vmatprep.subr.mxu0 0.0
        %970 = vmatpush1.msra.mxu0 0.0
        %971 = vmatprep.subr.mxu0 0.0
        %972 = vmatpush1.msra.mxu0 0.0
        %973 = vmatprep.subr.mxu0 0.0
        %974 = vmatpush1.msra.mxu0 0.0
        %975 = vmatprep.subr.mxu0 0.0
        %976 = vmatpush1.msra.mxu0 0.0
        %977 = vmatprep.subr.mxu0 0.0
        %978 = vmatpush1.msra.mxu0 0.0
        %979 = vmatprep.subr.mxu0 0.0
        %980 = vmatpush1.msra.mxu0 0.0
        %981 = vmatprep.subr.mxu0 0.0
        %982 = vmatpush1.msra.mxu0 0.0
        %983 = vmatprep.subr.mxu0 0.0
        %984 = vmatpush1.msra.mxu0 0.0
        %985 = vmatprep.subr.mxu0 0.0
        %986 = vmatpush1.msra.mxu0 0.0
        %987 = vmatprep.subr.mxu0 0.0
        %988 = vmatpush1.msra.mxu0 0.0
        %989 = vmatprep.subr.mxu0 0.0
        %990 = vmatpush1.msra.mxu0 0.0
        %991 = vmatprep.subr.mxu0 0.0
        %992 = vmatpush1.msra.mxu0 0.0
        %993 = vmatprep.subr.mxu0 0.0
        %994 = vmatpush1.msra.mxu0 0.0
        %995 = vmatprep.subr.mxu0 0.0
        %996 = vmatpush1.msra.mxu0 0.0
        %997 = vmatprep.subr.mxu0 0.0
        %998 = vmatpush1.msra.mxu0 0.0
        %999 = vmatprep.subr.mxu0 0.0
        %1000 = vmatpush1.msra.mxu0 0.0
        %1001 = vmatprep.subr.mxu0 0.0
        %1002 = vmatpush1.msra.mxu0 0.0
        %1003 = vmatprep.subr.mxu0 0.0
        %1004 = vmatpush1.msra.mxu0 0.0
        %1005 = vmatprep.subr.mxu0 0.0
        %1006 = vmatpush1.msra.mxu0 0.0
        %1007 = vmatprep.subr.mxu0 0.0
        %1008 = vmatpush1.msra.mxu0 0.0
        %1009 = vmatprep.subr.mxu0 0.0
        %1010 = vmatpush1.msra.mxu0 0.0
        %1011 = vmatprep.subr.mxu0 0.0
        %1012 = vmatpush1.msra.mxu0 0.0
        %1013 = vmatprep.subr.mxu0 0.0
        %1014 = vmatpush1.msra.mxu0 0.0
        %1015 = vmatprep.subr.mxu0 0.0
        %1016 = vmatpush1.msra.mxu0 0.0
        %1017 = vmatprep.subr.mxu0 0.0
        %1018 = vmatpush1.msra.mxu0 0.0
        %1019 = vmatprep.subr.mxu0 0.0
        %1020 = vmatpush1.msra.mxu0 0.0
        %1021 = vmatprep.mubr.f32.mxu0 0.0
        %1022 = vmatmul.mubr.f32.gmra.mrb[0].mxu0 %v934
        %v1023 = vpop.f32.mrb[0].mxu0
        %v1024 = vadd.f32 0.0, %v1023
        %v1025 = vpop.f32.mrb[0].mxu0
        %1026 = vmatprep.mubr.f32.mxu0 0.0
        %1027 = vmatmul.mubr.f32.gmra.mrb[0].mxu0 %v937
        %v1028 = vpop.f32.mrb[0].mxu0
        %v1029 = vadd.f32 0.0, %v1028
        %v1030 = vpop.f32.mrb[0].mxu0
        %1031 = vmatprep.mubr.f32.mxu0 0.0
        %1032 = vmatmul.mubr.f32.gmra.mrb[0].mxu0 %v940
        %v1033 = vpop.f32.mrb[0].mxu0
        %v1034 = vadd.f32 0.0, %v1033
        %v1035 = vpop.f32.mrb[0].mxu0
        %1036 = vmatprep.mubr.f32.mxu0 0.0
        %1037 = vmatmul.mubr.f32.gmra.mrb[0].mxu0 %v943
        %v1038 = vpop.f32.mrb[0].mxu0
        %v1039 = vadd.f32 0.0, %v1038
        %v1040 = vpop.f32.mrb[0].mxu0
        %1041 = vmatprep.mubr.f32.mxu0 0.0
        %1042 = vmatmul.mubr.f32.gmra.mrb[0].mxu0 %v946
        %v1043 = vpop.f32.mrb[0].mxu0
        %v1044 = vadd.f32 0.0, %v1043
        %v1045 = vpop.f32.mrb[0].mxu0
        %1046 = vmatprep.mubr.f32.mxu0 0.0
        %1047 = vmatmul.mubr.f32.gmra.mrb[0].mxu0 %v949
        %v1048 = vpop.f32.mrb[0].mxu0
        %v1049 = vadd.f32 0.0, %v1048
        %v1050 = vpop.f32.mrb[0].mxu0
        %1051 = vmatprep.mubr.f32.mxu0 0.0
        %1052 = vmatmul.mubr.f32.gmra.mrb[0].mxu0 %v952
        %v1053 = vpop.f32.mrb[0].mxu0
        %v1054 = vadd.f32 0.0, %v1053
        %v1055 = vpop.f32.mrb[0].mxu0
        %1056 = vmatprep.mubr.f32.mxu0 0.0
        %1057 = vmatmul.mubr.f32.gmra.mrb[0].mxu0 %v955
        %v1058 = vpop.f32.mrb[0].mxu0
        %v1059 = vadd.f32 0.0, %v1058
        %v1060 = vpop.f32.mrb[0].mxu0
        %1061 = vdwg.mxu0
        %v1062 = vmul.f32 %v284, %v284
        %v1063 = vmul.f32 %v285, %v285
        %v1064 = vmul.f32 %v286, %v286
        %v1065 = vmul.f32 %v287, %v287
        %v1066 = vmul.f32 %v288, %v288
        %v1067 = vmul.f32 %v289, %v289
        %v1068 = vmul.f32 %v290, %v290
        %v1069 = vmul.f32 %v291, %v291
        %v1070 = vmul.f32 %v308, %v308
        %v1071 = vmul.f32 %v309, %v309
        %v1072 = vmul.f32 %v310, %v310
        %v1073 = vmul.f32 %v311, %v311
        %v1074 = vmul.f32 %v312, %v312
        %v1075 = vmul.f32 %v313, %v313
        %v1076 = vmul.f32 %v314, %v314
        %v1077 = vmul.f32 %v315, %v315
        %v1078 = vadd.f32 %v1062, %v1070
        %v1079 = vadd.f32 %v1063, %v1071
        %v1080 = vadd.f32 %v1064, %v1072
        %v1081 = vadd.f32 %v1065, %v1073
        %v1082 = vadd.f32 %v1066, %v1074
        %v1083 = vadd.f32 %v1067, %v1075
        %v1084 = vadd.f32 %v1068, %v1076
        %v1085 = vadd.f32 %v1069, %v1077
        %1086 = vmatprep.subr.mxu0 0.0
        %1087 = vmatpush1.msra.mxu0 %v1078
        %1088 = vmatprep.subr.mxu0 0.0
        %1089 = vmatpush1.msra.mxu0 %v1079
        %1090 = vmatprep.subr.mxu0 0.0
        %1091 = vmatpush1.msra.mxu0 %v1080
        %1092 = vmatprep.subr.mxu0 0.0
        %1093 = vmatpush1.msra.mxu0 %v1081
        %1094 = vmatprep.subr.mxu0 0.0
        %1095 = vmatpush1.msra.mxu0 %v1082
        %1096 = vmatprep.subr.mxu0 0.0
        %1097 = vmatpush1.msra.mxu0 %v1083
        %1098 = vmatprep.subr.mxu0 0.0
        %1099 = vmatpush1.msra.mxu0 %v1084
        %1100 = vmatprep.subr.mxu0 0.0
        %1101 = vmatpush1.msra.mxu0 %v1085
        %1102 = vmatprep.subr.mxu0 0.0
        %1103 = vmatpush1.msra.mxu0 0.0
        %1104 = vmatprep.subr.mxu0 0.0
        %1105 = vmatpush1.msra.mxu0 0.0
        %1106 = vmatprep.subr.mxu0 0.0
        %1107 = vmatpush1.msra.mxu0 0.0
        %1108 = vmatprep.subr.mxu0 0.0
        %1109 = vmatpush1.msra.mxu0 0.0
        %1110 = vmatprep.subr.mxu0 0.0
        %1111 = vmatpush1.msra.mxu0 0.0
        %1112 = vmatprep.subr.mxu0 0.0
        %1113 = vmatpush1.msra.mxu0 0.0
        %1114 = vmatprep.subr.mxu0 0.0
        %1115 = vmatpush1.msra.mxu0 0.0
        %1116 = vmatprep.subr.mxu0 0.0
        %1117 = vmatpush1.msra.mxu0 0.0
        %1118 = vmatprep.subr.mxu0 0.0
        %1119 = vmatpush1.msra.mxu0 0.0
        %1120 = vmatprep.subr.mxu0 0.0
        %1121 = vmatpush1.msra.mxu0 0.0
        %1122 = vmatprep.subr.mxu0 0.0
        %1123 = vmatpush1.msra.mxu0 0.0
        %1124 = vmatprep.subr.mxu0 0.0
        %1125 = vmatpush1.msra.mxu0 0.0
        %1126 = vmatprep.subr.mxu0 0.0
        %1127 = vmatpush1.msra.mxu0 0.0
        %1128 = vmatprep.subr.mxu0 0.0
        %1129 = vmatpush1.msra.mxu0 0.0
        %1130 = vmatprep.subr.mxu0 0.0
        %1131 = vmatpush1.msra.mxu0 0.0
        %1132 = vmatprep.subr.mxu0 0.0
        %1133 = vmatpush1.msra.mxu0 0.0
        %1134 = vmatprep.subr.mxu0 0.0
        %1135 = vmatpush1.msra.mxu0 0.0
        %1136 = vmatprep.subr.mxu0 0.0
        %1137 = vmatpush1.msra.mxu0 0.0
        %1138 = vmatprep.subr.mxu0 0.0
        %1139 = vmatpush1.msra.mxu0 0.0
        %1140 = vmatprep.subr.mxu0 0.0
        %1141 = vmatpush1.msra.mxu0 0.0
        %1142 = vmatprep.subr.mxu0 0.0
        %1143 = vmatpush1.msra.mxu0 0.0
        %1144 = vmatprep.subr.mxu0 0.0
        %1145 = vmatpush1.msra.mxu0 0.0
        %1146 = vmatprep.subr.mxu0 0.0
        %1147 = vmatpush1.msra.mxu0 0.0
        %1148 = vmatprep.subr.mxu0 0.0
        %1149 = vmatpush1.msra.mxu0 0.0
        %1150 = vmatprep.mubr.f32.mxu0 0.0
        %1151 = vmatmul.mubr.f32.gmra.mrb[0].mxu0 %v328
        %v1152 = vpop.f32.mrb[0].mxu0
        %v1153 = vadd.f32 0.0, %v1152
        %v1154 = vpop.f32.mrb[0].mxu0
        %1155 = vmatprep.mubr.f32.mxu0 0.0
        %1156 = vmatmul.mubr.f32.gmra.mrb[0].mxu0 %v331
        %v1157 = vpop.f32.mrb[0].mxu0
        %v1158 = vadd.f32 0.0, %v1157
        %v1159 = vpop.f32.mrb[0].mxu0
        %1160 = vmatprep.mubr.f32.mxu0 0.0
        %1161 = vmatmul.mubr.f32.gmra.mrb[0].mxu0 %v334
        %v1162 = vpop.f32.mrb[0].mxu0
        %v1163 = vadd.f32 0.0, %v1162
        %v1164 = vpop.f32.mrb[0].mxu0
        %1165 = vmatprep.mubr.f32.mxu0 0.0
        %1166 = vmatmul.mubr.f32.gmra.mrb[0].mxu0 %v337
        %v1167 = vpop.f32.mrb[0].mxu0
        %v1168 = vadd.f32 0.0, %v1167
        %v1169 = vpop.f32.mrb[0].mxu0
        %1170 = vmatprep.mubr.f32.mxu0 0.0
        %1171 = vmatmul.mubr.f32.gmra.mrb[0].mxu0 %v340
        %v1172 = vpop.f32.mrb[0].mxu0
        %v1173 = vadd.f32 0.0, %v1172
        %v1174 = vpop.f32.mrb[0].mxu0
        %1175 = vmatprep.mubr.f32.mxu0 0.0
        %1176 = vmatmul.mubr.f32.gmra.mrb[0].mxu0 %v343
        %v1177 = vpop.f32.mrb[0].mxu0
        %v1178 = vadd.f32 0.0, %v1177
        %v1179 = vpop.f32.mrb[0].mxu0
        %1180 = vmatprep.mubr.f32.mxu0 0.0
        %1181 = vmatmul.mubr.f32.gmra.mrb[0].mxu0 %v346
        %v1182 = vpop.f32.mrb[0].mxu0
        %v1183 = vadd.f32 0.0, %v1182
        %v1184 = vpop.f32.mrb[0].mxu0
        %1185 = vmatprep.mubr.f32.mxu0 0.0
        %1186 = vmatmul.mubr.f32.gmra.mrb[0].mxu0 %v349
        %v1187 = vpop.f32.mrb[0].mxu0
        %v1188 = vadd.f32 0.0, %v1187
        %v1189 = vpop.f32.mrb[0].mxu0
        %1190 = vdwg.mxu0
        %v1192 = vsel %vm456, %v1153, 0
        %v1195 = vsel %vm456, %v1158, 0
        %v1198 = vsel %vm456, %v1163, 0
        %v1201 = vsel %vm456, %v1168, 0
        %v1204 = vsel %vm456, %v1173, 0
        %v1207 = vsel %vm456, %v1178, 0
        %v1210 = vsel %vm456, %v1183, 0
        %v1213 = vsel %vm456, %v1188, 0
        %1215 = vmatprep.subr.mxu0 0.0
        %1216 = vmatpush1.msra.mxu0 %v324
        %1217 = vmatprep.subr.mxu0 0.0
        %1218 = vmatpush1.msra.mxu0 %v325
        %1219 = vmatprep.subr.mxu0 0.0
        %1220 = vmatpush1.msra.mxu0 0.0
        %1221 = vmatprep.subr.mxu0 0.0
        %1222 = vmatpush1.msra.mxu0 0.0
        %1223 = vmatprep.subr.mxu0 0.0
        %1224 = vmatpush1.msra.mxu0 0.0
        %1225 = vmatprep.subr.mxu0 0.0
        %1226 = vmatpush1.msra.mxu0 0.0
        %1227 = vmatprep.subr.mxu0 0.0
        %1228 = vmatpush1.msra.mxu0 0.0
        %1229 = vmatprep.subr.mxu0 0.0
        %1230 = vmatpush1.msra.mxu0 0.0
        %1231 = vmatprep.subr.mxu0 0.0
        %1232 = vmatpush1.msra.mxu0 0.0
        %1233 = vmatprep.subr.mxu0 0.0
        %1234 = vmatpush1.msra.mxu0 0.0
        %1235 = vmatprep.subr.mxu0 0.0
        %1236 = vmatpush1.msra.mxu0 0.0
        %1237 = vmatprep.subr.mxu0 0.0
        %1238 = vmatpush1.msra.mxu0 0.0
        %1239 = vmatprep.subr.mxu0 0.0
        %1240 = vmatpush1.msra.mxu0 0.0
        %1241 = vmatprep.subr.mxu0 0.0
        %1242 = vmatpush1.msra.mxu0 0.0
        %1243 = vmatprep.subr.mxu0 0.0
        %1244 = vmatpush1.msra.mxu0 0.0
        %1245 = vmatprep.subr.mxu0 0.0
        %1246 = vmatpush1.msra.mxu0 0.0
        %1247 = vmatprep.subr.mxu0 0.0
        %1248 = vmatpush1.msra.mxu0 0.0
        %1249 = vmatprep.subr.mxu0 0.0
        %1250 = vmatpush1.msra.mxu0 0.0
        %1251 = vmatprep.subr.mxu0 0.0
        %1252 = vmatpush1.msra.mxu0 0.0
        %1253 = vmatprep.subr.mxu0 0.0
        %1254 = vmatpush1.msra.mxu0 0.0
        %1255 = vmatprep.subr.mxu0 0.0
        %1256 = vmatpush1.msra.mxu0 0.0
        %1257 = vmatprep.subr.mxu0 0.0
        %1258 = vmatpush1.msra.mxu0 0.0
        %1259 = vmatprep.subr.mxu0 0.0
        %1260 = vmatpush1.msra.mxu0 0.0
        %1261 = vmatprep.subr.mxu0 0.0
        %1262 = vmatpush1.msra.mxu0 0.0
        %1263 = vmatprep.subr.mxu0 0.0
        %1264 = vmatpush1.msra.mxu0 0.0
        %1265 = vmatprep.subr.mxu0 0.0
        %1266 = vmatpush1.msra.mxu0 0.0
        %1267 = vmatprep.subr.mxu0 0.0
        %1268 = vmatpush1.msra.mxu0 0.0
        %1269 = vmatprep.subr.mxu0 0.0
        %1270 = vmatpush1.msra.mxu0 0.0
        %1271 = vmatprep.subr.mxu0 0.0
        %1272 = vmatpush1.msra.mxu0 0.0
        %1273 = vmatprep.subr.mxu0 0.0
        %1274 = vmatpush1.msra.mxu0 0.0
        %1275 = vmatprep.subr.mxu0 0.0
        %1276 = vmatpush1.msra.mxu0 0.0
        %1277 = vmatprep.subr.mxu0 0.0
        %1278 = vmatpush1.msra.mxu0 0.0
        %1279 = vmatprep.mubr.f32.mxu0 0.0
        %1280 = vmatmul.mubr.f32.gmra.mrb[0].mxu0 %v1192
        %v1281 = vpop.f32.mrb[0].mxu0
        %v1282 = vadd.f32 0.0, %v1281
        %v1283 = vpop.f32.mrb[0].mxu0
        %1284 = vmatprep.mubr.f32.mxu0 0.0
        %1285 = vmatmul.mubr.f32.gmra.mrb[0].mxu0 %v1195
        %v1286 = vpop.f32.mrb[0].mxu0
        %v1287 = vadd.f32 0.0, %v1286
        %v1288 = vpop.f32.mrb[0].mxu0
        %1289 = vmatprep.mubr.f32.mxu0 0.0
        %1290 = vmatmul.mubr.f32.gmra.mrb[0].mxu0 %v1198
        %v1291 = vpop.f32.mrb[0].mxu0
        %v1292 = vadd.f32 0.0, %v1291
        %v1293 = vpop.f32.mrb[0].mxu0
        %1294 = vmatprep.mubr.f32.mxu0 0.0
        %1295 = vmatmul.mubr.f32.gmra.mrb[0].mxu0 %v1201
        %v1296 = vpop.f32.mrb[0].mxu0
        %v1297 = vadd.f32 0.0, %v1296
        %v1298 = vpop.f32.mrb[0].mxu0
        %1299 = vmatprep.mubr.f32.mxu0 0.0
        %1300 = vmatmul.mubr.f32.gmra.mrb[0].mxu0 %v1204
        %v1301 = vpop.f32.mrb[0].mxu0
        %v1302 = vadd.f32 0.0, %v1301
        %v1303 = vpop.f32.mrb[0].mxu0
        %1304 = vmatprep.mubr.f32.mxu0 0.0
        %1305 = vmatmul.mubr.f32.gmra.mrb[0].mxu0 %v1207
        %v1306 = vpop.f32.mrb[0].mxu0
        %v1307 = vadd.f32 0.0, %v1306
        %v1308 = vpop.f32.mrb[0].mxu0
        %1309 = vmatprep.mubr.f32.mxu0 0.0
        %1310 = vmatmul.mubr.f32.gmra.mrb[0].mxu0 %v1210
        %v1311 = vpop.f32.mrb[0].mxu0
        %v1312 = vadd.f32 0.0, %v1311
        %v1313 = vpop.f32.mrb[0].mxu0
        %1314 = vmatprep.mubr.f32.mxu0 0.0
        %1315 = vmatmul.mubr.f32.gmra.mrb[0].mxu0 %v1213
        %v1316 = vpop.f32.mrb[0].mxu0
        %v1317 = vadd.f32 0.0, %v1316
        %v1318 = vpop.f32.mrb[0].mxu0
        %1319 = vdwg.mxu0
        %v1320 = vmul.f32 %v548, %v782
        %v1321 = vmul.f32 %v553, %v787
        %v1322 = vmul.f32 %v558, %v792
        %v1323 = vmul.f32 %v563, %v797
        %v1324 = vmul.f32 %v568, %v802
        %v1325 = vmul.f32 %v573, %v807
        %v1326 = vmul.f32 %v578, %v812
        %v1327 = vmul.f32 %v583, %v817
        %v1328 = vmul.f32 %v1320, 2.0
        %v1329 = vmul.f32 %v1321, 2.0
        %v1330 = vmul.f32 %v1322, 2.0
        %v1331 = vmul.f32 %v1323, 2.0
        %v1332 = vmul.f32 %v1324, 2.0
        %v1333 = vmul.f32 %v1325, 2.0
        %v1334 = vmul.f32 %v1326, 2.0
        %v1335 = vmul.f32 %v1327, 2.0
        %v1336 = vmul.f32 %v548, %v548
        %v1337 = vmul.f32 %v553, %v553
        %v1338 = vmul.f32 %v558, %v558
        %v1339 = vmul.f32 %v563, %v563
        %v1340 = vmul.f32 %v568, %v568
        %v1341 = vmul.f32 %v573, %v573
        %v1342 = vmul.f32 %v578, %v578
        %v1343 = vmul.f32 %v583, %v583
        %v1344 = vmul.f32 %v782, %v782
        %v1345 = vmul.f32 %v787, %v787
        %v1346 = vmul.f32 %v792, %v792
        %v1347 = vmul.f32 %v797, %v797
        %v1348 = vmul.f32 %v802, %v802
        %v1349 = vmul.f32 %v807, %v807
        %v1350 = vmul.f32 %v812, %v812
        %v1351 = vmul.f32 %v817, %v817
        %v1352 = vadd.f32 %v1336, %v1344
        %v1353 = vadd.f32 %v1337, %v1345
        %v1354 = vadd.f32 %v1338, %v1346
        %v1355 = vadd.f32 %v1339, %v1347
        %v1356 = vadd.f32 %v1340, %v1348
        %v1357 = vadd.f32 %v1341, %v1349
        %v1358 = vadd.f32 %v1342, %v1350
        %v1359 = vadd.f32 %v1343, %v1351
        %v1360 = vadd.f32 %v1328, 6.5025
        %v1361 = vadd.f32 %v1329, 6.5025
        %v1362 = vadd.f32 %v1330, 6.5025
        %v1363 = vadd.f32 %v1331, 6.5025
        %v1364 = vadd.f32 %v1332, 6.5025
        %v1365 = vadd.f32 %v1333, 6.5025
        %v1366 = vadd.f32 %v1334, 6.5025
        %v1367 = vadd.f32 %v1335, 6.5025
        %v1368 = vadd.f32 %v1352, 6.5025
        %v1369 = vadd.f32 %v1353, 6.5025
        %v1370 = vadd.f32 %v1354, 6.5025
        %v1371 = vadd.f32 %v1355, 6.5025
        %v1372 = vadd.f32 %v1356, 6.5025
        %v1373 = vadd.f32 %v1357, 6.5025
        %v1374 = vadd.f32 %v1358, 6.5025
        %v1375 = vadd.f32 %v1359, 6.5025
        %v1376 = vrcp.pop %v1368
        %v1377 = vrcp.pop %v1369
        %v1378 = vrcp.pop %v1370
        %v1379 = vrcp.pop %v1371
        %v1380 = vrcp.pop %v1372
        %v1381 = vrcp.pop %v1373
        %v1382 = vrcp.pop %v1374
        %v1383 = vrcp.pop %v1375
        %v1384 = vmul.f32 %v1360, %v1376
        %v1385 = vmul.f32 %v1361, %v1377
        %v1386 = vmul.f32 %v1362, %v1378
        %v1387 = vmul.f32 %v1363, %v1379
        %v1388 = vmul.f32 %v1364, %v1380
        %v1389 = vmul.f32 %v1365, %v1381
        %v1390 = vmul.f32 %v1366, %v1382
        %v1391 = vmul.f32 %v1367, %v1383
        %v1392 = vmul.f32 %v1024, 2.0
        %v1393 = vmul.f32 %v1029, 2.0
        %v1394 = vmul.f32 %v1034, 2.0
        %v1395 = vmul.f32 %v1039, 2.0
        %v1396 = vmul.f32 %v1044, 2.0
        %v1397 = vmul.f32 %v1049, 2.0
        %v1398 = vmul.f32 %v1054, 2.0
        %v1399 = vmul.f32 %v1059, 2.0
        %v1400 = vsub.f32 %v1392, %v1328
        %v1401 = vsub.f32 %v1393, %v1329
        %v1402 = vsub.f32 %v1394, %v1330
        %v1403 = vsub.f32 %v1395, %v1331
        %v1404 = vsub.f32 %v1396, %v1332
        %v1405 = vsub.f32 %v1397, %v1333
        %v1406 = vsub.f32 %v1398, %v1334
        %v1407 = vsub.f32 %v1399, %v1335
        %v1408 = vadd.f32 %v1400, 58.5225
        %v1409 = vadd.f32 %v1401, 58.5225
        %v1410 = vadd.f32 %v1402, 58.5225
        %v1411 = vadd.f32 %v1403, 58.5225
        %v1412 = vadd.f32 %v1404, 58.5225
        %v1413 = vadd.f32 %v1405, 58.5225
        %v1414 = vadd.f32 %v1406, 58.5225
        %v1415 = vadd.f32 %v1407, 58.5225
        %v1416 = vsub.f32 %v1282, %v1352
        %v1417 = vsub.f32 %v1287, %v1353
        %v1418 = vsub.f32 %v1292, %v1354
        %v1419 = vsub.f32 %v1297, %v1355
        %v1420 = vsub.f32 %v1302, %v1356
        %v1421 = vsub.f32 %v1307, %v1357
        %v1422 = vsub.f32 %v1312, %v1358
        %v1423 = vsub.f32 %v1317, %v1359
        %v1424 = vadd.f32 %v1416, 58.5225
        %v1425 = vadd.f32 %v1417, 58.5225
        %v1426 = vadd.f32 %v1418, 58.5225
        %v1427 = vadd.f32 %v1419, 58.5225
        %v1428 = vadd.f32 %v1420, 58.5225
        %v1429 = vadd.f32 %v1421, 58.5225
        %v1430 = vadd.f32 %v1422, 58.5225
        %v1431 = vadd.f32 %v1423, 58.5225
        %v1432 = vrcp.pop %v1424
        %v1433 = vrcp.pop %v1425
        %v1434 = vrcp.pop %v1426
        %v1435 = vrcp.pop %v1427
        %v1436 = vrcp.pop %v1428
        %v1437 = vrcp.pop %v1429
        %v1438 = vrcp.pop %v1430
        %v1439 = vrcp.pop %v1431
        %v1440 = vmul.f32 %v1408, %v1432
        %v1441 = vmul.f32 %v1409, %v1433
        %v1442 = vmul.f32 %v1410, %v1434
        %v1443 = vmul.f32 %v1411, %v1435
        %v1444 = vmul.f32 %v1412, %v1436
        %v1445 = vmul.f32 %v1413, %v1437
        %v1446 = vmul.f32 %v1414, %v1438
        %v1447 = vmul.f32 %v1415, %v1439
        %v1448 = vmul.f32 %v1384, %v1440
        %v1449 = vmul.f32 %v1385, %v1441
        %v1450 = vmul.f32 %v1386, %v1442
        %v1451 = vmul.f32 %v1387, %v1443
        %v1452 = vmul.f32 %v1388, %v1444
        %v1453 = vmul.f32 %v1389, %v1445
        %v1454 = vmul.f32 %v1390, %v1446
        %v1455 = vmul.f32 %v1391, %v1447
        %v1456 = vsel %vm456, %v1448, 0.0
        %v1457 = vsel %vm456, %v1449, 0.0
        %v1458 = vadd.f32 %v1456, %v1457
        %v1459 = vsel %vm456, %v1450, 0.0
        %v1460 = vadd.f32 %v1458, %v1459
        %v1461 = vsel %vm456, %v1451, 0.0
        %v1462 = vadd.f32 %v1460, %v1461
        %v1463 = vsel %vm456, %v1452, 0.0
        %v1464 = vadd.f32 %v1462, %v1463
        %v1465 = vsel %vm456, %v1453, 0.0
        %v1466 = vadd.f32 %v1464, %v1465
        %v1467 = vsel %vm456, %v1454, 0.0
        %v1468 = vadd.f32 %v1466, %v1467
        %v1469 = vsel %vm456, %v1455, 0.0
        %v1470 = vadd.f32 %v1468, %v1469
        %1471 = vadd.xlane.f32.xlu0 %v1470
        %v1472 = vpop.xlane.xlu0 %1471
        %v1473 = vrot.slane %v1472, 4
        %v1474 = vadd.f32 %v1472, %v1473
        %v1475 = vrot.slane %v1474, 2
        %v1476 = vadd.f32 %v1474, %v1475
        %v1477 = vrot.slane %v1476, 1
        %v1478 = vadd.f32 %v1476, %v1477
        %s1479 = vtos %v1478
        %s1480 = smul.f32 %s1479, 0.0009765625
        %v1481 = vstv %s1480
        %vm1482 = vcmask 0
        %1483 = vst.msk [vmem:[%s267] sm:$0x1] %vm1482, %v1481
        %p1484 = scmp.lt.s32.totalorder %s21, 1
        %s1485 = scalar_select %p1484, %s21, 1
        %s1486 = scalar_lea.vmem %s4, %s1485
        // Predicated region
        $region49: #{ssim_loss.1} parent=35 // pred_check
          %p1487 = pneg %p133
        $region50: #{ssim_loss.1} parent=35 // pred_check_branch
          %1489 = sbr.rel (%p1487) target = $region52
        $region51: #{ssim_loss.1} parent=35 // pred_region
          _
        $region52: #{ssim_loss.1} parent=35 // pred_fallthru
          _
      $region36: #{ssim_loss.1} parent=5 // pred_fallthru
        _
      %p1490 = scmp.le.s32.totalorder 2, %s16
      // Predicated region
      $region53: #{ssim_loss.1} parent=5 // pred_check
        %p1491 = pneg %p1490
      $region54: #{ssim_loss.1} parent=5 // pred_check_branch
        %1493 = sbr.rel (%p1491) target = $region56
      $region55: #{ssim_loss.1} parent=5 // pred_region
        %s1494 = ssub.s32 %s16, 2
        // Predicated region
        $region57: #{ssim_loss.1} parent=55 // pred_check
          %p1495 = pneg %p139
        $region58: #{ssim_loss.1} parent=55 // pred_check_branch
          %1497 = sbr.rel (%p1495) target = $region60
        $region59: #{ssim_loss.1} parent=55 // pred_region
          %p1498 = scmp.lt.s32.totalorder %s22, 1
          %s1499 = scalar_select %p1498, %s22, 1
          %s1500 = scalar_lea.vmem %s4, %s1499
        $region60: #{ssim_loss.1} parent=55 // pred_fallthru
          _
      $region56: #{ssim_loss.1} parent=5 // pred_fallthru
        _
    $region6: #{ssim_loss.1} parent=1 // loop_footer
      %s20 = sadd.s32 1, %s16
    $region7: #{ssim_loss.1} parent=1 // loop_footer_branch
      %15 = sbr.rel target = $region3
    $region8: #{ssim_loss.1} parent=1 // loop_exit
      _
    %1501 = vsyncpa [#allocation3], 1
    %s1502 = scalar_lea.sflag [#allocation3], 1
    %1503 = vsyncpa %s1502, 1
    %1504 = vsyncpa [#allocation5], 1
    %s1505 = scalar_lea.sflag [#allocation5], 1
    %1506 = vsyncpa %s1505, 1

</llo_original>
